<compile_context>
chip_gen: v5e
topology: v5e:2x2
jax: 0.10.0
libtpu: 0.0.40
codegen_flags: <defaults>
</compile_context>

<pallas_src>
import functools
import math

import jax
import jax.numpy as jnp
from jax.experimental import pallas as pl
from jax.experimental.pallas import tpu as pltpu


def _attention_kernel(x_ref, wqkv_ref, bqkv_ref, wo_ref, aux_ref, o_ref,
                      *, n_heads, head_dim, ln_eps):
    x = x_ref[0]                                       # (N, C) f32
    c = n_heads * head_dim

    # ---- fused QKV projection: one bf16 MXU pass, f32 accumulation ---------
    qkv = jnp.dot(x.astype(jnp.bfloat16), wqkv_ref[...],
                  preferred_element_type=jnp.float32)
    qkv = qkv + bqkv_ref[...]                          # (N, 3C)

    # 1/temper is pre-folded into Wq / bq at packing time; a scalar attn_mask
    # shifts every logit equally (softmax no-op), so neither appears here.
    q = qkv[:, :c]
    k = qkv[:, c:2 * c]
    v = qkv[:, 2 * c:]

    # ---- split heads once: (N, C) -> (G, N, M), bf16 for the MXU -----------
    def to_heads(t):
        tb = t.astype(jnp.bfloat16)
        return jnp.stack(
            [tb[:, h * head_dim:(h + 1) * head_dim] for h in range(n_heads)],
            axis=0)

    qh = to_heads(q)                                   # (G, N, M)
    kh = to_heads(k)
    vh = to_heads(v)

    # ---- all heads in one batched contraction (leading batch dim) ----------
    s = jnp.einsum("gnm,gkm->gnk", qh, kh,
                   preferred_element_type=jnp.float32)  # (G, N, N)
    s_max = jnp.max(s, axis=-1, keepdims=True)
    e = jnp.exp(s - s_max)
    p = e * pl.reciprocal(jnp.sum(e, axis=-1, keepdims=True), approx=True)
    oh = jnp.einsum("gnk,gkm->gnm", p.astype(jnp.bfloat16), vh,
                    preferred_element_type=jnp.float32)  # (G, N, M)

    # ---- merge heads, output projection, residual + LayerNorm --------------
    attn = jnp.concatenate([oh[h] for h in range(n_heads)], axis=-1)  # (N, C)

    aux = aux_ref[...]                                  # (3, C) = [bo; gamma; beta]
    proj = jnp.dot(attn.astype(jnp.bfloat16), wo_ref[...],
                   preferred_element_type=jnp.float32) + aux[0:1, :]

    y = x + proj                                        # residual in f32
    mean = jnp.mean(y, axis=-1, keepdims=True)
    centered = y - mean
    var = jnp.mean(centered * centered, axis=-1, keepdims=True)
    y_norm = centered * jax.lax.rsqrt(var + ln_eps)
    out = y_norm * aux[1:2, :] + aux[2:3, :]
    o_ref[0] = out.astype(o_ref.dtype)


def _pack_params(params, temper):
    """Fuse QKV weights/biases (folding 1/temper into the q branch), cast MXU
    weights to bf16, and pack bo / ln_gamma / ln_beta into one (3, C) array."""
    inv_t = jnp.float32(1.0 / temper)
    w_qkv = jnp.concatenate(
        [params["wq"] * inv_t, params["wk"], params["wv"]], axis=1
    ).astype(jnp.bfloat16)                              # (C, 3C)
    b_qkv = jnp.concatenate(
        [params["bq"] * inv_t, params["bk"], params["bv"]], axis=1
    ).astype(jnp.float32)                               # (1, 3C)
    w_o = params["wo"].astype(jnp.bfloat16)             # (C, C)
    aux = jnp.concatenate(
        [params["bo"], params["ln_gamma"], params["ln_beta"]], axis=0
    ).astype(jnp.float32)                               # (3, C)
    return w_qkv, b_qkv, w_o, aux


def dypw_atten_dw_forward(x, params, *, p_groups, attn_mask=0.0):
    """x: (B, N, C) float32. params: dict of pre-transposed (in, out) weights."""
    # A scalar attn_mask adds the same constant to every logit; softmax is
    # shift-invariant so it is dropped inside the kernel.
    # TODO(synk): tensor-valued attn_mask (per-position / causal) would need an
    # extra VMEM input; not implemented.
    if not isinstance(attn_mask, (int, float)):
        raise NotImplementedError("only scalar attn_mask is supported")

    B, N, C = x.shape
    G = p_groups
    M = C // G
    temper = math.sqrt(C // G)

    w_qkv, b_qkv, w_o, aux = _pack_params(params, temper)

    kernel = functools.partial(
        _attention_kernel, n_heads=G, head_dim=M, ln_eps=1e-5)

    # Explicit VMEM budget: double-buffered x/out blocks + double-buffered
    # resident weights + rough bound on in-kernel temporaries, with headroom.
    slab = N * C * 4
    vmem_est = (
        2 * 2 * slab                                          # x + out, f32, 2-buf
        + 2 * (3 * C * C * 2 + 3 * C * 4 + C * C * 2 + 8 * C * 4)  # weights/bias/aux
        + 16 * slab + 3 * G * N * N * 4                       # temporaries
    )
    vmem_limit = int(min(64 * 1024 * 1024,
                         max(32 * 1024 * 1024, 2 * vmem_est)))

    return pl.pallas_call(
        kernel,
        out_shape=jax.ShapeDtypeStruct((B, N, C), x.dtype),
        grid_spec=pltpu.PrefetchScalarGridSpec(
            num_scalar_prefetch=0,
            grid=(B,),
            in_specs=[
                pl.BlockSpec((1, N, C), lambda b: (b, 0, 0)),   # x
                pl.BlockSpec((C, 3 * C), lambda b: (0, 0)),     # fused Wqkv (bf16)
                pl.BlockSpec((1, 3 * C), lambda b: (0, 0)),     # fused bias (f32)
                pl.BlockSpec((C, C), lambda b: (0, 0)),         # Wv out-proj (bf16)
                pl.BlockSpec((3, C), lambda b: (0, 0)),         # [bo; gamma; beta]
            ],
            out_specs=pl.BlockSpec((1, N, C), lambda b: (b, 0, 0)),
        ),
        compiler_params=pltpu.CompilerParams(
            dimension_semantics=("parallel",),
            vmem_limit_bytes=vmem_limit,
        ),
    )(x, w_qkv, b_qkv, w_o, aux)


def _reference_forward(x, params, *, p_groups, attn_mask=0.0):
    """Pure-JAX f32 reference mirroring the PyTorch forward semantics."""
    B, N, C = x.shape
    G = p_groups
    M = C // G
    temper = math.sqrt(C // G)

    def lin(a, w, b):
        return a @ w + b[0]

    q = lin(x, params["wq"], params["bq"]).reshape(B, N, G, M).transpose(0, 2, 1, 3)
    k = lin(x, params["wk"], params["bk"]).reshape(B, N, G, M).transpose(0, 2, 3, 1)
    v = lin(x, params["wv"], params["bv"]).reshape(B, N, G, M).transpose(0, 2, 1, 3)
    s = jnp.einsum("bgnm,bgmk->bgnk", q, k)
    s = jax.nn.softmax(s / temper + attn_mask, axis=-1)
    o = jnp.einsum("bgnk,bgkm->bgnm", s, v)
    o = o.transpose(0, 2, 1, 3).reshape(B, N, C)
    o = lin(o, params["wo"], params["bo"])
    y = x + o
    mean = jnp.mean(y, axis=-1, keepdims=True)
    var = jnp.mean((y - mean) ** 2, axis=-1, keepdims=True)
    yn = (y - mean) / jnp.sqrt(var + 1e-5)
    return yn * params["ln_gamma"][0] + params["ln_beta"][0]


def make_params(key, query_dim):
    """Deterministic synthetic parameters (xavier-like weights; zero q/k/v/Wv
    biases, LN gamma=1 / beta=0, matching the module's init)."""
    C = query_dim
    ks = jax.random.split(key, 4)
    xavier = math.sqrt(6.0 / (C + C))
    # weights stored as (in, out) == PyTorch weight.T
    return {
        "wq": jax.random.uniform(ks[0], (C, C), jnp.float32, -xavier, xavier),
        "bq": jnp.zeros((1, C), jnp.float32),
        "wk": jax.random.uniform(ks[1], (C, C), jnp.float32, -xavier, xavier),
        "bk": jnp.zeros((1, C), jnp.float32),
        "wv": jax.random.uniform(ks[2], (C, C), jnp.float32, -xavier, xavier),
        "bv": jnp.zeros((1, C), jnp.float32),
        "wo": jax.random.uniform(ks[3], (C, C), jnp.float32, -xavier, xavier),
        "bo": jnp.zeros((1, C), jnp.float32),
        "ln_gamma": jnp.ones((1, C), jnp.float32),
        "ln_beta": jnp.zeros((1, C), jnp.float32),
    }


# TODO(synk): filter_generator_channel / filter_generator_group / filter_bias
# from __init__ are dead code in the module's forward (only referenced inside a
# commented-out docstring), so they are intentionally not implemented.

if __name__ == "__main__":
    # Small, forward-consistent, lane-friendly shapes:
    # B=2 batches, N=16 queries (multiple of 8), C=128 query_dim (multiple of
    # 128 -> lane-dense output stores), G=8 groups -> head_dim M=16.
    B, N, C, G = 2, 16, 128, 8
    key = jax.random.PRNGKey(0)
    k_x, k_p = jax.random.split(key)

    x = jax.random.normal(k_x, (B, N, C), dtype=jnp.float32)
    params = make_params(k_p, C)

    out = dypw_atten_dw_forward(x, params, p_groups=G, attn_mask=0.0)
    out = jax.block_until_ready(out)

    ref = _reference_forward(x, params, p_groups=G, attn_mask=0.0)
    assert out.shape == (B, N, C)
    # Kernel feeds the MXU in bf16 (f32 accumulation); compare against the
    # pure-f32 reference with a correspondingly relaxed tolerance.
    assert jnp.allclose(out, ref, atol=5e-2, rtol=5e-2), (
        "Pallas output mismatch vs reference; max abs diff = "
        f"{float(jnp.max(jnp.abs(out - ref)))}")

    print("KERNEL_OK")
</pallas_src>

<mosaic_0001>
module attributes {stable_mosaic.version = 11 : i64} {
  func.func @_attention_kernel(%arg0: i32, %arg1: memref<1x16x128xf32, #tpu.memory_space<vmem>>, %arg2: memref<128x384xbf16, #tpu.memory_space<vmem>>, %arg3: memref<1x384xf32, #tpu.memory_space<vmem>>, %arg4: memref<128x128xbf16, #tpu.memory_space<vmem>>, %arg5: memref<3x128xf32, #tpu.memory_space<vmem>>, %arg6: memref<1x16x128xf32, #tpu.memory_space<vmem>>) attributes {dimension_semantics = [#tpu.dimension_semantics<parallel>], iteration_bounds = array<i64: 2>, scalar_prefetch = 0 : i64, scratch_operands = 0 : i64, tpu.core_type = #tpu.core_type<tc>, window_params = [{transform_indices = @transform_0, window_bounds = array<i64: 1, 16, 128>}, {pipeline_mode = #tpu.pipeline_mode<synchronous>, transform_indices = @transform_1, window_bounds = array<i64: 128, 384>}, {pipeline_mode = #tpu.pipeline_mode<synchronous>, transform_indices = @transform_2, window_bounds = array<i64: 1, 384>}, {pipeline_mode = #tpu.pipeline_mode<synchronous>, transform_indices = @transform_3, window_bounds = array<i64: 128, 128>}, {pipeline_mode = #tpu.pipeline_mode<synchronous>, transform_indices = @transform_4, window_bounds = array<i64: 3, 128>}, {transform_indices = @transform_5, window_bounds = array<i64: 1, 16, 128>}]} {
    %c0 = arith.constant 0 : index
    %c0_0 = arith.constant 0 : index
    %c0_1 = arith.constant 0 : index
    %0 = vector.load %arg1[%c0, %c0_0, %c0_1] : memref<1x16x128xf32, #tpu.memory_space<vmem>>, vector<1x16x128xf32>
    %1 = vector.shape_cast %0 : vector<1x16x128xf32> to vector<16x128xf32>
    %2 = arith.truncf %1 : vector<16x128xf32> to vector<16x128xbf16>
    %c0_2 = arith.constant 0 : index
    %c0_3 = arith.constant 0 : index
    %3 = vector.load %arg2[%c0_2, %c0_3] : memref<128x384xbf16, #tpu.memory_space<vmem>>, vector<128x384xbf16>
    %cst = arith.constant dense<0.000000e+00> : vector<16x384xf32>
    %4 = tpu.matmul %2, %3, %cst {dimension_numbers = #tpu.dot_dimension_numbers<[1], [0], [0], [1], [0, 0, 1, 1], [], []>} : vector<16x128xbf16>, vector<128x384xbf16>, vector<16x384xf32> -> vector<16x384xf32>
    %c0_4 = arith.constant 0 : index
    %c0_5 = arith.constant 0 : index
    %5 = vector.load %arg3[%c0_4, %c0_5] : memref<1x384xf32, #tpu.memory_space<vmem>>, vector<1x384xf32>
    %6 = vector.broadcast %5 : vector<1x384xf32> to vector<16x384xf32>
    %7 = arith.addf %4, %6 : vector<16x384xf32>
    %8 = vector.extract_strided_slice %7 {offsets = [0, 0], sizes = [16, 128], strides = [1, 1]} : vector<16x384xf32> to vector<16x128xf32>
    %9 = vector.extract_strided_slice %7 {offsets = [0, 128], sizes = [16, 128], strides = [1, 1]} : vector<16x384xf32> to vector<16x128xf32>
    %10 = vector.extract_strided_slice %7 {offsets = [0, 256], sizes = [16, 128], strides = [1, 1]} : vector<16x384xf32> to vector<16x128xf32>
    %11 = arith.truncf %8 : vector<16x128xf32> to vector<16x128xbf16>
    %12 = vector.extract_strided_slice %11 {offsets = [0, 0], sizes = [16, 16], strides = [1, 1]} : vector<16x128xbf16> to vector<16x16xbf16>
    %13 = vector.extract_strided_slice %11 {offsets = [0, 16], sizes = [16, 16], strides = [1, 1]} : vector<16x128xbf16> to vector<16x16xbf16>
    %14 = vector.extract_strided_slice %11 {offsets = [0, 32], sizes = [16, 16], strides = [1, 1]} : vector<16x128xbf16> to vector<16x16xbf16>
    %15 = vector.extract_strided_slice %11 {offsets = [0, 48], sizes = [16, 16], strides = [1, 1]} : vector<16x128xbf16> to vector<16x16xbf16>
    %16 = vector.extract_strided_slice %11 {offsets = [0, 64], sizes = [16, 16], strides = [1, 1]} : vector<16x128xbf16> to vector<16x16xbf16>
    %17 = vector.extract_strided_slice %11 {offsets = [0, 80], sizes = [16, 16], strides = [1, 1]} : vector<16x128xbf16> to vector<16x16xbf16>
    %18 = vector.extract_strided_slice %11 {offsets = [0, 96], sizes = [16, 16], strides = [1, 1]} : vector<16x128xbf16> to vector<16x16xbf16>
    %19 = vector.extract_strided_slice %11 {offsets = [0, 112], sizes = [16, 16], strides = [1, 1]} : vector<16x128xbf16> to vector<16x16xbf16>
    %20 = vector.shape_cast %12 : vector<16x16xbf16> to vector<1x16x16xbf16>
    %21 = vector.shape_cast %13 : vector<16x16xbf16> to vector<1x16x16xbf16>
    %22 = vector.shape_cast %14 : vector<16x16xbf16> to vector<1x16x16xbf16>
    %23 = vector.shape_cast %15 : vector<16x16xbf16> to vector<1x16x16xbf16>
    %24 = vector.shape_cast %16 : vector<16x16xbf16> to vector<1x16x16xbf16>
    %25 = vector.shape_cast %17 : vector<16x16xbf16> to vector<1x16x16xbf16>
    %26 = vector.shape_cast %18 : vector<16x16xbf16> to vector<1x16x16xbf16>
    %27 = vector.shape_cast %19 : vector<16x16xbf16> to vector<1x16x16xbf16>
    %28 = tpu.concatenate %20, %21, %22, %23, %24, %25, %26, %27 in 0 : vector<1x16x16xbf16>, vector<1x16x16xbf16>, vector<1x16x16xbf16>, vector<1x16x16xbf16>, vector<1x16x16xbf16>, vector<1x16x16xbf16>, vector<1x16x16xbf16>, vector<1x16x16xbf16> -> vector<8x16x16xbf16>
    %29 = arith.truncf %9 : vector<16x128xf32> to vector<16x128xbf16>
    %30 = vector.extract_strided_slice %29 {offsets = [0, 0], sizes = [16, 16], strides = [1, 1]} : vector<16x128xbf16> to vector<16x16xbf16>
    %31 = vector.extract_strided_slice %29 {offsets = [0, 16], sizes = [16, 16], strides = [1, 1]} : vector<16x128xbf16> to vector<16x16xbf16>
    %32 = vector.extract_strided_slice %29 {offsets = [0, 32], sizes = [16, 16], strides = [1, 1]} : vector<16x128xbf16> to vector<16x16xbf16>
    %33 = vector.extract_strided_slice %29 {offsets = [0, 48], sizes = [16, 16], strides = [1, 1]} : vector<16x128xbf16> to vector<16x16xbf16>
    %34 = vector.extract_strided_slice %29 {offsets = [0, 64], sizes = [16, 16], strides = [1, 1]} : vector<16x128xbf16> to vector<16x16xbf16>
    %35 = vector.extract_strided_slice %29 {offsets = [0, 80], sizes = [16, 16], strides = [1, 1]} : vector<16x128xbf16> to vector<16x16xbf16>
    %36 = vector.extract_strided_slice %29 {offsets = [0, 96], sizes = [16, 16], strides = [1, 1]} : vector<16x128xbf16> to vector<16x16xbf16>
    %37 = vector.extract_strided_slice %29 {offsets = [0, 112], sizes = [16, 16], strides = [1, 1]} : vector<16x128xbf16> to vector<16x16xbf16>
    %38 = vector.shape_cast %30 : vector<16x16xbf16> to vector<1x16x16xbf16>
    %39 = vector.shape_cast %31 : vector<16x16xbf16> to vector<1x16x16xbf16>
    %40 = vector.shape_cast %32 : vector<16x16xbf16> to vector<1x16x16xbf16>
    %41 = vector.shape_cast %33 : vector<16x16xbf16> to vector<1x16x16xbf16>
    %42 = vector.shape_cast %34 : vector<16x16xbf16> to vector<1x16x16xbf16>
    %43 = vector.shape_cast %35 : vector<16x16xbf16> to vector<1x16x16xbf16>
    %44 = vector.shape_cast %36 : vector<16x16xbf16> to vector<1x16x16xbf16>
    %45 = vector.shape_cast %37 : vector<16x16xbf16> to vector<1x16x16xbf16>
    %46 = tpu.concatenate %38, %39, %40, %41, %42, %43, %44, %45 in 0 : vector<1x16x16xbf16>, vector<1x16x16xbf16>, vector<1x16x16xbf16>, vector<1x16x16xbf16>, vector<1x16x16xbf16>, vector<1x16x16xbf16>, vector<1x16x16xbf16>, vector<1x16x16xbf16> -> vector<8x16x16xbf16>
    %47 = arith.truncf %10 : vector<16x128xf32> to vector<16x128xbf16>
    %48 = vector.extract_strided_slice %47 {offsets = [0, 0], sizes = [16, 16], strides = [1, 1]} : vector<16x128xbf16> to vector<16x16xbf16>
    %49 = vector.extract_strided_slice %47 {offsets = [0, 16], sizes = [16, 16], strides = [1, 1]} : vector<16x128xbf16> to vector<16x16xbf16>
    %50 = vector.extract_strided_slice %47 {offsets = [0, 32], sizes = [16, 16], strides = [1, 1]} : vector<16x128xbf16> to vector<16x16xbf16>
    %51 = vector.extract_strided_slice %47 {offsets = [0, 48], sizes = [16, 16], strides = [1, 1]} : vector<16x128xbf16> to vector<16x16xbf16>
    %52 = vector.extract_strided_slice %47 {offsets = [0, 64], sizes = [16, 16], strides = [1, 1]} : vector<16x128xbf16> to vector<16x16xbf16>
    %53 = vector.extract_strided_slice %47 {offsets = [0, 80], sizes = [16, 16], strides = [1, 1]} : vector<16x128xbf16> to vector<16x16xbf16>
    %54 = vector.extract_strided_slice %47 {offsets = [0, 96], sizes = [16, 16], strides = [1, 1]} : vector<16x128xbf16> to vector<16x16xbf16>
    %55 = vector.extract_strided_slice %47 {offsets = [0, 112], sizes = [16, 16], strides = [1, 1]} : vector<16x128xbf16> to vector<16x16xbf16>
    %56 = vector.shape_cast %48 : vector<16x16xbf16> to vector<1x16x16xbf16>
    %57 = vector.shape_cast %49 : vector<16x16xbf16> to vector<1x16x16xbf16>
    %58 = vector.shape_cast %50 : vector<16x16xbf16> to vector<1x16x16xbf16>
    %59 = vector.shape_cast %51 : vector<16x16xbf16> to vector<1x16x16xbf16>
    %60 = vector.shape_cast %52 : vector<16x16xbf16> to vector<1x16x16xbf16>
    %61 = vector.shape_cast %53 : vector<16x16xbf16> to vector<1x16x16xbf16>
    %62 = vector.shape_cast %54 : vector<16x16xbf16> to vector<1x16x16xbf16>
    %63 = vector.shape_cast %55 : vector<16x16xbf16> to vector<1x16x16xbf16>
    %64 = tpu.concatenate %56, %57, %58, %59, %60, %61, %62, %63 in 0 : vector<1x16x16xbf16>, vector<1x16x16xbf16>, vector<1x16x16xbf16>, vector<1x16x16xbf16>, vector<1x16x16xbf16>, vector<1x16x16xbf16>, vector<1x16x16xbf16>, vector<1x16x16xbf16> -> vector<8x16x16xbf16>
    "tpu.trace_start"() <{level = 10 : i32, message = "gnm,gkm->gnk"}> : () -> ()
    %cst_6 = arith.constant dense<0.000000e+00> : vector<8x16x16xf32>
    %65 = tpu.matmul %28, %46, %cst_6 {dimension_numbers = #tpu.dot_dimension_numbers<[2], [2], [1], [1], [0, 0, 0, 1, 1, 1], [0], [0]>} : vector<8x16x16xbf16>, vector<8x16x16xbf16>, vector<8x16x16xf32> -> vector<8x16x16xf32>
    "tpu.trace_stop"() : () -> ()
    %cst_7 = arith.constant dense<0xFF800000> : vector<8x16xf32>
    %66 = vector.multi_reduction <maximumf>, %65, %cst_7 [2] : vector<8x16x16xf32> to vector<8x16xf32>
    %67 = vector.shape_cast %66 : vector<8x16xf32> to vector<8x16x1xf32>
    %68 = vector.broadcast %67 : vector<8x16x1xf32> to vector<8x16x16xf32>
    %69 = arith.subf %65, %68 : vector<8x16x16xf32>
    %70 = math.exp %69 : vector<8x16x16xf32>
    %cst_8 = arith.constant dense<0.000000e+00> : vector<8x16xf32>
    %71 = vector.multi_reduction <add>, %70, %cst_8 [2] : vector<8x16x16xf32> to vector<8x16xf32>
    %72 = vector.shape_cast %71 : vector<8x16xf32> to vector<8x16x1xf32>
    %73 = tpu.reciprocal %72 {approx = true} : vector<8x16x1xf32> -> vector<8x16x1xf32>
    %74 = vector.broadcast %73 : vector<8x16x1xf32> to vector<8x16x16xf32>
    %75 = arith.mulf %70, %74 : vector<8x16x16xf32>
    %76 = arith.truncf %75 : vector<8x16x16xf32> to vector<8x16x16xbf16>
    "tpu.trace_start"() <{level = 10 : i32, message = "gnk,gkm->gnm"}> : () -> ()
    %cst_9 = arith.constant dense<0.000000e+00> : vector<8x16x16xf32>
    %77 = tpu.matmul %76, %64, %cst_9 {dimension_numbers = #tpu.dot_dimension_numbers<[2], [1], [1], [2], [0, 0, 0, 1, 1, 2], [0], [0]>} : vector<8x16x16xbf16>, vector<8x16x16xbf16>, vector<8x16x16xf32> -> vector<8x16x16xf32>
    "tpu.trace_stop"() : () -> ()
    %78 = vector.extract_strided_slice %77 {offsets = [0, 0, 0], sizes = [1, 16, 16], strides = [1, 1, 1]} : vector<8x16x16xf32> to vector<1x16x16xf32>
    %79 = vector.shape_cast %78 : vector<1x16x16xf32> to vector<16x16xf32>
    %80 = vector.extract_strided_slice %77 {offsets = [1, 0, 0], sizes = [1, 16, 16], strides = [1, 1, 1]} : vector<8x16x16xf32> to vector<1x16x16xf32>
    %81 = vector.shape_cast %80 : vector<1x16x16xf32> to vector<16x16xf32>
    %82 = vector.extract_strided_slice %77 {offsets = [2, 0, 0], sizes = [1, 16, 16], strides = [1, 1, 1]} : vector<8x16x16xf32> to vector<1x16x16xf32>
    %83 = vector.shape_cast %82 : vector<1x16x16xf32> to vector<16x16xf32>
    %84 = vector.extract_strided_slice %77 {offsets = [3, 0, 0], sizes = [1, 16, 16], strides = [1, 1, 1]} : vector<8x16x16xf32> to vector<1x16x16xf32>
    %85 = vector.shape_cast %84 : vector<1x16x16xf32> to vector<16x16xf32>
    %86 = vector.extract_strided_slice %77 {offsets = [4, 0, 0], sizes = [1, 16, 16], strides = [1, 1, 1]} : vector<8x16x16xf32> to vector<1x16x16xf32>
    %87 = vector.shape_cast %86 : vector<1x16x16xf32> to vector<16x16xf32>
    %88 = vector.extract_strided_slice %77 {offsets = [5, 0, 0], sizes = [1, 16, 16], strides = [1, 1, 1]} : vector<8x16x16xf32> to vector<1x16x16xf32>
    %89 = vector.shape_cast %88 : vector<1x16x16xf32> to vector<16x16xf32>
    %90 = vector.extract_strided_slice %77 {offsets = [6, 0, 0], sizes = [1, 16, 16], strides = [1, 1, 1]} : vector<8x16x16xf32> to vector<1x16x16xf32>
    %91 = vector.shape_cast %90 : vector<1x16x16xf32> to vector<16x16xf32>
    %92 = vector.extract_strided_slice %77 {offsets = [7, 0, 0], sizes = [1, 16, 16], strides = [1, 1, 1]} : vector<8x16x16xf32> to vector<1x16x16xf32>
    %93 = vector.shape_cast %92 : vector<1x16x16xf32> to vector<16x16xf32>
    %94 = tpu.concatenate %79, %81, %83, %85, %87, %89, %91, %93 in 1 : vector<16x16xf32>, vector<16x16xf32>, vector<16x16xf32>, vector<16x16xf32>, vector<16x16xf32>, vector<16x16xf32>, vector<16x16xf32>, vector<16x16xf32> -> vector<16x128xf32>
    %c0_10 = arith.constant 0 : index
    %c0_11 = arith.constant 0 : index
    %95 = vector.load %arg5[%c0_10, %c0_11] : memref<3x128xf32, #tpu.memory_space<vmem>>, vector<3x128xf32>
    %96 = arith.truncf %94 : vector<16x128xf32> to vector<16x128xbf16>
    %c0_12 = arith.constant 0 : index
    %c0_13 = arith.constant 0 : index
    %97 = vector.load %arg4[%c0_12, %c0_13] : memref<128x128xbf16, #tpu.memory_space<vmem>>, vector<128x128xbf16>
    %cst_14 = arith.constant dense<0.000000e+00> : vector<16x128xf32>
    %98 = tpu.matmul %96, %97, %cst_14 {dimension_numbers = #tpu.dot_dimension_numbers<[1], [0], [0], [1], [0, 0, 1, 1], [], []>} : vector<16x128xbf16>, vector<128x128xbf16>, vector<16x128xf32> -> vector<16x128xf32>
    %99 = vector.extract_strided_slice %95 {offsets = [0, 0], sizes = [1, 128], strides = [1, 1]} : vector<3x128xf32> to vector<1x128xf32>
    %100 = vector.broadcast %99 : vector<1x128xf32> to vector<16x128xf32>
    %101 = arith.addf %98, %100 : vector<16x128xf32>
    %102 = arith.addf %1, %101 : vector<16x128xf32>
    %cst_15 = arith.constant dense<0.000000e+00> : vector<16xf32>
    %103 = vector.multi_reduction <add>, %102, %cst_15 [1] : vector<16x128xf32> to vector<16xf32>
    %104 = vector.shape_cast %103 : vector<16xf32> to vector<16x1xf32>
    %cst_16 = arith.constant 1.280000e+02 : f32
    %105 = vector.broadcast %cst_16 : f32 to vector<16x1xf32>
    %106 = arith.divf %104, %105 : vector<16x1xf32>
    %107 = vector.broadcast %106 : vector<16x1xf32> to vector<16x128xf32>
    %108 = arith.subf %102, %107 : vector<16x128xf32>
    %109 = arith.mulf %108, %108 : vector<16x128xf32>
    %cst_17 = arith.constant dense<0.000000e+00> : vector<16xf32>
    %110 = vector.multi_reduction <add>, %109, %cst_17 [1] : vector<16x128xf32> to vector<16xf32>
    %111 = vector.shape_cast %110 : vector<16xf32> to vector<16x1xf32>
    %cst_18 = arith.constant 1.280000e+02 : f32
    %112 = vector.broadcast %cst_18 : f32 to vector<16x1xf32>
    %113 = arith.divf %111, %112 : vector<16x1xf32>
    %cst_19 = arith.constant 9.99999974E-6 : f32
    %114 = vector.broadcast %cst_19 : f32 to vector<16x1xf32>
    %115 = arith.addf %113, %114 : vector<16x1xf32>
    %116 = math.rsqrt %115 : vector<16x1xf32>
    %117 = vector.broadcast %116 : vector<16x1xf32> to vector<16x128xf32>
    %118 = arith.mulf %108, %117 : vector<16x128xf32>
    %119 = vector.extract_strided_slice %95 {offsets = [1, 0], sizes = [1, 128], strides = [1, 1]} : vector<3x128xf32> to vector<1x128xf32>
    %120 = vector.broadcast %119 : vector<1x128xf32> to vector<16x128xf32>
    %121 = arith.mulf %118, %120 : vector<16x128xf32>
    %122 = vector.extract_strided_slice %95 {offsets = [2, 0], sizes = [1, 128], strides = [1, 1]} : vector<3x128xf32> to vector<1x128xf32>
    %123 = vector.broadcast %122 : vector<1x128xf32> to vector<16x128xf32>
    %124 = arith.addf %121, %123 : vector<16x128xf32>
    %c0_20 = arith.constant 0 : index
    %c0_21 = arith.constant 0 : index
    %c0_22 = arith.constant 0 : index
    %125 = vector.load %arg6[%c0_20, %c0_21, %c0_22] : memref<1x16x128xf32, #tpu.memory_space<vmem>>, vector<1x16x128xf32>
    %126 = vector.shape_cast %125 : vector<1x16x128xf32> to vector<16x128xf32>
    %127 = vector.shape_cast %124 : vector<16x128xf32> to vector<1x16x128xf32>
    tpu.vector_store %arg6[%c0_20, %c0_21, %c0_22], %127 {strides = array<i32>} : memref<1x16x128xf32, #tpu.memory_space<vmem>>, vector<1x16x128xf32>,
    return
  }
  func.func @transform_0(%arg0: i32) -> (i32, i32, i32) {
    %c0_i32 = arith.constant 0 : i32
    %c0_i32_0 = arith.constant 0 : i32
    %c0_i32_1 = arith.constant 0 : i32
    return %arg0, %c0_i32, %c0_i32_0 : i32, i32, i32
  }
  func.func @transform_1(%arg0: i32) -> (i32, i32) {
    %c0_i32 = arith.constant 0 : i32
    %c0_i32_0 = arith.constant 0 : i32
    %c0_i32_1 = arith.constant 0 : i32
    return %c0_i32, %c0_i32_0 : i32, i32
  }
  func.func @transform_2(%arg0: i32) -> (i32, i32) {
    %c0_i32 = arith.constant 0 : i32
    %c0_i32_0 = arith.constant 0 : i32
    %c0_i32_1 = arith.constant 0 : i32
    return %c0_i32, %c0_i32_0 : i32, i32
  }
  func.func @transform_3(%arg0: i32) -> (i32, i32) {
    %c0_i32 = arith.constant 0 : i32
    %c0_i32_0 = arith.constant 0 : i32
    %c0_i32_1 = arith.constant 0 : i32
    return %c0_i32, %c0_i32_0 : i32, i32
  }
  func.func @transform_4(%arg0: i32) -> (i32, i32) {
    %c0_i32 = arith.constant 0 : i32
    %c0_i32_0 = arith.constant 0 : i32
    %c0_i32_1 = arith.constant 0 : i32
    return %c0_i32, %c0_i32_0 : i32, i32
  }
  func.func @transform_5(%arg0: i32) -> (i32, i32, i32) {
    %c0_i32 = arith.constant 0 : i32
    %c0_i32_0 = arith.constant 0 : i32
    %c0_i32_1 = arith.constant 0 : i32
    return %arg0, %c0_i32, %c0_i32_0 : i32, i32, i32
  }
}

</mosaic_0001>

<llo_original>
// kernel: tpu_custom_call.1
$region0: #{tpu_custom_call.1}
  #allocation0 [shape = 'u32[]', space=smem, size = 0x4, offset = 0x4, fixed_abs, tag = 'smem constant byte address 0x4 - core index']
  #allocation1 [shape = 'u32[72,128]{1,0:T(1,128)}', space=vmem, size = 0x9000, scoped, tag = 'internal scratch']
  %s0 = inlined_call_operand.hbm [shape: f32[2,16,128], index: 0, kind: input, shape index: {}]
  %s1 = inlined_call_operand.hbm [shape: bf16[128,384], index: 1, kind: input, shape index: {}]
  %s2 = inlined_call_operand.hbm [shape: f32[1,384], index: 2, kind: input, shape index: {}]
  %s3 = inlined_call_operand.hbm [shape: bf16[128,128], index: 3, kind: input, shape index: {}]
  %s4 = inlined_call_operand.hbm [shape: f32[3,128], index: 4, kind: input, shape index: {}]
  %s5 = inlined_call_operand.hbm [shape: f32[2,16,128], index: 5, kind: output, shape index: {}]
  %s6 = sld [smem:[#allocation0]]
  $region73: #{tpu_custom_call.1} parent=0
    _
  %s8 = ssub.s32 1, %s6
  %s9 = scalar_select 0, %s8, %s6
  $region1: #{tpu_custom_call.1} parent=0
    #allocation2 [shape = 'u8[16384]{0}', space=vmem, size = 0x4000, scoped, tag = 'input window, operand 0']
    #allocation3 [shape = 's32[2]{0}', space=sflag, size = 0x8, scoped, tag = 'scoped memory for tpu_custom_call.1']
    #allocation4 [shape = 's32[2]{0}', space=sflag, size = 0x8, scoped, tag = 'scoped memory for tpu_custom_call.1']
    #allocation5 [shape = 'u8[98304]{0}', space=vmem, size = 0x18000, scoped, tag = 'input window, operand 1, single buffered']
    #allocation6 [shape = 's32[1]{0}', space=sflag, size = 0x4, scoped, tag = 'scoped memory for tpu_custom_call.1']
    #allocation7 [shape = 'u8[1536]{0}', space=vmem, size = 0x800, scoped, tag = 'input window, operand 2, single buffered']
    #allocation8 [shape = 'u8[32768]{0}', space=vmem, size = 0x8000, scoped, tag = 'input window, operand 3, single buffered']
    #allocation9 [shape = 's32[1]{0}', space=sflag, size = 0x4, scoped, tag = 'scoped memory for tpu_custom_call.1']
    #allocation10 [shape = 'u8[2048]{0}', space=vmem, size = 0x800, scoped, tag = 'input window, operand 4, single buffered']
    #allocation11 [shape = 'u8[16384]{0}', space=vmem, size = 0x4000, scoped, tag = 'output window, operand 0']
    %10 = vsyncpa [#allocation3], 0
    %s11 = scalar_lea.sflag [#allocation3], 1
    %12 = vsyncpa %s11, 0
    %13 = vsyncpa [#allocation6], 0
    %14 = vsyncpa [#allocation9], 0
    %15 = vsyncpa [#allocation4], 0
    %s16 = scalar_lea.sflag [#allocation4], 1
    %17 = vsyncpa %s16, 0
    loop: start=0, step=1, limit=4
    $region2: #{tpu_custom_call.1} parent=1 // loop_pre_header
      _
    $region3: #{tpu_custom_call.1} parent=1 // loop_header
      %s19 = sphi 0, %s23
      %p20 = scmp.ge.s32.totalorder %s19, 4
      %s29 = sphi 0, %s31
      %s32 = sphi 0, %s29
      %s33 = sphi 0, %s32
      %s49 = sphi 0, %s33
      %s53 = sphi 0, %s53
      %s55 = sphi 0, %s53
      %s56 = sphi 0, %s55
      %s70 = sphi 0, %s56
      %s74 = sphi 0, %s74
      %s76 = sphi 0, %s74
      %s77 = sphi 0, %s76
      %s91 = sphi 0, %s77
      %s95 = sphi 0, %s95
      %s97 = sphi 0, %s95
      %s98 = sphi 0, %s97
      %s112 = sphi 0, %s98
      %s116 = sphi 0, %s116
      %s118 = sphi 0, %s116
      %s119 = sphi 0, %s118
      %s133 = sphi 0, %s119
      %s139 = sphi 0, %s141
      %s142 = sphi 0, %s139
      %s143 = sphi 0, %s142
      %s159 = sphi 0, %s143
    $region4: #{tpu_custom_call.1} parent=1 // loop_header_branch
      %22 = sbr.rel (%p20) target = $region8
    $region5: #{tpu_custom_call.1} parent=1 // loop_body
      %s24 = ssub.s32 %s19, 1
      %s25 = ssub.s32 %s19, 2
      %s26 = sadd.s32 %s19, 1
      %s27 = ssub.s32 %s19, %s26
      %p28 = scmp.eq.s32.totalorder %s27, 0
      %s30 = sadd.s32 %s29, 1
      %s31 = scalar_select %p28, %s29, %s30
      %p34 = pneg %p28
      %p35 = scmp.eq.s32.totalorder %s19, 1
      %p36 = por %p34, %p35
      %p37 = scmp.ne.s32.totalorder %s29, %s32
      %p38 = scmp.eq.s32.totalorder %s19, 0
      %p39 = por %p37, %p38
      %p40 = scmp.ne.s32.totalorder %s29, %s32
      %p41 = scmp.eq.s32.totalorder %s24, 1
      %p42 = por %p40, %p41
      %p43 = scmp.ne.s32.totalorder %s32, %s33
      %p44 = scmp.eq.s32.totalorder %s24, 0
      %p45 = por %p43, %p44
      %p46 = scmp.ne.s32.totalorder %s32, %s33
      %p47 = scmp.eq.s32.totalorder %s25, 1
      %p48 = por %p46, %p47
      %p50 = scmp.ne.s32.totalorder %s33, %s49
      %p51 = scmp.eq.s32.totalorder %s25, 0
      %p52 = por %p50, %p51
      %s54 = sadd.s32 %s53, 1
      %p57 = scmp.eq.s32.totalorder %s19, 1
      %p58 = scmp.ne.s32.totalorder %s53, %s55
      %p59 = scmp.eq.s32.totalorder %s19, 0
      %p60 = por %p58, %p59
      %p61 = scmp.ne.s32.totalorder %s53, %s55
      %p62 = scmp.eq.s32.totalorder %s24, 1
      %p63 = por %p61, %p62
      %p64 = scmp.ne.s32.totalorder %s55, %s56
      %p65 = scmp.eq.s32.totalorder %s24, 0
      %p66 = por %p64, %p65
      %p67 = scmp.ne.s32.totalorder %s55, %s56
      %p68 = scmp.eq.s32.totalorder %s25, 1
      %p69 = por %p67, %p68
      %p71 = scmp.ne.s32.totalorder %s56, %s70
      %p72 = scmp.eq.s32.totalorder %s25, 0
      %p73 = por %p71, %p72
      %s75 = sadd.s32 %s74, 1
      %p78 = scmp.eq.s32.totalorder %s19, 1
      %p79 = scmp.ne.s32.totalorder %s74, %s76
      %p80 = scmp.eq.s32.totalorder %s19, 0
      %p81 = por %p79, %p80
      %p82 = scmp.ne.s32.totalorder %s74, %s76
      %p83 = scmp.eq.s32.totalorder %s24, 1
      %p84 = por %p82, %p83
      %p85 = scmp.ne.s32.totalorder %s76, %s77
      %p86 = scmp.eq.s32.totalorder %s24, 0
      %p87 = por %p85, %p86
      %p88 = scmp.ne.s32.totalorder %s76, %s77
      %p89 = scmp.eq.s32.totalorder %s25, 1
      %p90 = por %p88, %p89
      %p92 = scmp.ne.s32.totalorder %s77, %s91
      %p93 = scmp.eq.s32.totalorder %s25, 0
      %p94 = por %p92, %p93
      %s96 = sadd.s32 %s95, 1
      %p99 = scmp.eq.s32.totalorder %s19, 1
      %p100 = scmp.ne.s32.totalorder %s95, %s97
      %p101 = scmp.eq.s32.totalorder %s19, 0
      %p102 = por %p100, %p101
      %p103 = scmp.ne.s32.totalorder %s95, %s97
      %p104 = scmp.eq.s32.totalorder %s24, 1
      %p105 = por %p103, %p104
      %p106 = scmp.ne.s32.totalorder %s97, %s98
      %p107 = scmp.eq.s32.totalorder %s24, 0
      %p108 = por %p106, %p107
      %p109 = scmp.ne.s32.totalorder %s97, %s98
      %p110 = scmp.eq.s32.totalorder %s25, 1
      %p111 = por %p109, %p110
      %p113 = scmp.ne.s32.totalorder %s98, %s112
      %p114 = scmp.eq.s32.totalorder %s25, 0
      %p115 = por %p113, %p114
      %s117 = sadd.s32 %s116, 1
      %p120 = scmp.eq.s32.totalorder %s19, 1
      %p121 = scmp.ne.s32.totalorder %s116, %s118
      %p122 = scmp.eq.s32.totalorder %s19, 0
      %p123 = por %p121, %p122
      %p124 = scmp.ne.s32.totalorder %s116, %s118
      %p125 = scmp.eq.s32.totalorder %s24, 1
      %p126 = por %p124, %p125
      %p127 = scmp.ne.s32.totalorder %s118, %s119
      %p128 = scmp.eq.s32.totalorder %s24, 0
      %p129 = por %p127, %p128
      %p130 = scmp.ne.s32.totalorder %s118, %s119
      %p131 = scmp.eq.s32.totalorder %s25, 1
      %p132 = por %p130, %p131
      %p134 = scmp.ne.s32.totalorder %s119, %s133
      %p135 = scmp.eq.s32.totalorder %s25, 0
      %p136 = por %p134, %p135
      %s137 = ssub.s32 %s19, %s26
      %p138 = scmp.eq.s32.totalorder %s137, 0
      %s140 = sadd.s32 %s139, 1
      %s141 = scalar_select %p138, %s139, %s140
      %p144 = pneg %p138
      %p145 = scmp.eq.s32.totalorder %s19, 1
      %p146 = por %p144, %p145
      %p147 = scmp.ne.s32.totalorder %s139, %s142
      %p148 = scmp.eq.s32.totalorder %s19, 0
      %p149 = por %p147, %p148
      %p150 = scmp.ne.s32.totalorder %s139, %s142
      %p151 = scmp.eq.s32.totalorder %s24, 1
      %p152 = por %p150, %p151
      %p153 = scmp.ne.s32.totalorder %s142, %s143
      %p154 = scmp.eq.s32.totalorder %s24, 0
      %p155 = por %p153, %p154
      %p156 = scmp.ne.s32.totalorder %s142, %s143
      %p157 = scmp.eq.s32.totalorder %s25, 1
      %p158 = por %p156, %p157
      %p160 = scmp.ne.s32.totalorder %s143, %s159
      %p161 = scmp.eq.s32.totalorder %s25, 0
      %p162 = por %p160, %p161
      %p163 = scmp.le.s32.totalorder 1, %s19
      %p164 = scmp.lt.s32.totalorder %s19, 3
      %p165 = pnand %p163, %p164
      %p166 = pneg %p165
      // Predicated region
      $region9: #{tpu_custom_call.1} parent=5 // pred_check
        _
      $region10: #{tpu_custom_call.1} parent=5 // pred_check_branch
        %168 = sbr.rel (%p165) target = $region12
      $region11: #{tpu_custom_call.1} parent=5 // pred_region
        %s169 = ssub.s32 %s19, 1
        // Predicated region
        $region13: #{tpu_custom_call.1} parent=11 // pred_check
          %p170 = pneg %p66
        $region14: #{tpu_custom_call.1} parent=11 // pred_check_branch
          %172 = sbr.rel (%p170) target = $region16
        $region15: #{tpu_custom_call.1} parent=11 // pred_region
          %174 = vsyncadd [#allocation6], 0
          %s175 = sshll.u32 %s1, 4
          %s176 = int_to_ptr.hbm [resolvable:$true] %s175
          %s177 = sshll.u32 [#allocation5], 4
          %s178 = int_to_ptr.vmem [resolvable:$true] %s177
          %183 = dma.hbm_to_vmem [thread:$0]  %s176, 3072, %s178, [#allocation6], 192, 192, 12
        $region16: #{tpu_custom_call.1} parent=11 // pred_fallthru
          _
        // Predicated region
        $region17: #{tpu_custom_call.1} parent=11 // pred_check
          %p184 = pneg %p87
        $region18: #{tpu_custom_call.1} parent=11 // pred_check_branch
          %186 = sbr.rel (%p184) target = $region20
        $region19: #{tpu_custom_call.1} parent=11 // pred_region
          %188 = vsyncadd [#allocation6], 0
          %s190 = sshll.u32 %s2, 4
          %s191 = int_to_ptr.hbm [resolvable:$true] %s190
          %s192 = sshll.u32 [#allocation7], 4
          %s193 = int_to_ptr.vmem [resolvable:$true] %s192
          %195 = dma.hbm_to_vmem [thread:$0]  %s191, 48, %s193, [#allocation6]
        $region20: #{tpu_custom_call.1} parent=11 // pred_fallthru
          _
        // Predicated region
        $region21: #{tpu_custom_call.1} parent=11 // pred_check
          %p196 = pneg %p108
        $region22: #{tpu_custom_call.1} parent=11 // pred_check_branch
          %198 = sbr.rel (%p196) target = $region24
        $region23: #{tpu_custom_call.1} parent=11 // pred_region
          %200 = vsyncadd [#allocation9], 0
          %s201 = sshll.u32 %s3, 4
          %s202 = int_to_ptr.hbm [resolvable:$true] %s201
          %s203 = sshll.u32 [#allocation8], 4
          %s204 = int_to_ptr.vmem [resolvable:$true] %s203
          %209 = dma.hbm_to_vmem [thread:$0]  %s202, 1024, %s204, [#allocation9], 64, 64, 4
        $region24: #{tpu_custom_call.1} parent=11 // pred_fallthru
          _
        // Predicated region
        $region25: #{tpu_custom_call.1} parent=11 // pred_check
          %p210 = pneg %p129
        $region26: #{tpu_custom_call.1} parent=11 // pred_check_branch
          %212 = sbr.rel (%p210) target = $region28
        $region27: #{tpu_custom_call.1} parent=11 // pred_region
          %214 = vsyncadd [#allocation9], 0
          %s216 = sshll.u32 %s4, 4
          %s217 = int_to_ptr.hbm [resolvable:$true] %s216
          %s218 = sshll.u32 [#allocation10], 4
          %s219 = int_to_ptr.vmem [resolvable:$true] %s218
          %221 = dma.hbm_to_vmem [thread:$0]  %s217, 64, %s219, [#allocation9]
        $region28: #{tpu_custom_call.1} parent=11 // pred_fallthru
          _
      $region12: #{tpu_custom_call.1} parent=5 // pred_fallthru
        _
      %p222 = scmp.lt.s32.totalorder %s19, 2
      // Predicated region
      $region29: #{tpu_custom_call.1} parent=5 // pred_check
        %p223 = pneg %p222
      $region30: #{tpu_custom_call.1} parent=5 // pred_check_branch
        %225 = sbr.rel (%p223) target = $region32
      $region31: #{tpu_custom_call.1} parent=5 // pred_region
        // Predicated region
        $region33: #{tpu_custom_call.1} parent=31 // pred_check
          %p226 = pneg %p39
        $region34: #{tpu_custom_call.1} parent=31 // pred_check_branch
          %228 = sbr.rel (%p226) target = $region36
        $region35: #{tpu_custom_call.1} parent=31 // pred_region
          %s229 = sand.u32 %s29, 1
          %s230 = scalar_lea.sflag [#allocation3], %s229
          %s231 = sand.u32 %s29, 1
          %s232 = smul.addr %s231, 16
          %s233 = scalar_lea.vmem [#allocation2], %s232
          %235 = vsyncadd %s230, 0
          %s236 = smul.addr %s19, 2
          %s237 = smul.addr %s236, 8
          %s238 = scalar_lea.hbm %s0, %s237
          %s239 = sshll.u32 %s238, 4
          %s240 = int_to_ptr.hbm [resolvable:$true] %s239
          %s241 = sshll.u32 %s233, 4
          %s242 = int_to_ptr.vmem [resolvable:$true] %s241
          %247 = dma.hbm_to_vmem [thread:$0]  %s240, 256, %s242, %s230, 128, 128, 8
        $region36: #{tpu_custom_call.1} parent=31 // pred_fallthru
          _
      $region32: #{tpu_custom_call.1} parent=5 // pred_fallthru
        _
      %p248 = scmp.le.s32.totalorder 1, %s19
      %p249 = scmp.lt.s32.totalorder %s19, 3
      %p250 = pnand %p248, %p249
      %p251 = pneg %p250
      // Predicated region
      $region37: #{tpu_custom_call.1} parent=5 // pred_check
        _
      $region38: #{tpu_custom_call.1} parent=5 // pred_check_branch
        %253 = sbr.rel (%p250) target = $region40
      $region39: #{tpu_custom_call.1} parent=5 // pred_region
        %s254 = ssub.s32 %s19, 1
        %s255 = sand.u32 %s32, 1
        %s256 = scalar_lea.sflag [#allocation3], %s255
        %s257 = sand.u32 %s32, 1
        %s258 = smul.addr %s257, 16
        %s259 = scalar_lea.vmem [#allocation2], %s258
        // Predicated region
        $region41: #{tpu_custom_call.1} parent=39 // pred_check
          %p260 = pneg %p45
        $region42: #{tpu_custom_call.1} parent=39 // pred_check_branch
          %262 = sbr.rel (%p260) target = $region44
        $region43: #{tpu_custom_call.1} parent=39 // pred_region
          %264 = dma.done %s256, 256
        $region44: #{tpu_custom_call.1} parent=39 // pred_fallthru
          _
        // Predicated region
        $region45: #{tpu_custom_call.1} parent=39 // pred_check
          %p265 = pneg %p66
        $region46: #{tpu_custom_call.1} parent=39 // pred_check_branch
          %267 = sbr.rel (%p265) target = $region48
        $region47: #{tpu_custom_call.1} parent=39 // pred_region
          %269 = dma.done [#allocation6], 3072
        $region48: #{tpu_custom_call.1} parent=39 // pred_fallthru
          _
        // Predicated region
        $region49: #{tpu_custom_call.1} parent=39 // pred_check
          %p270 = pneg %p87
        $region50: #{tpu_custom_call.1} parent=39 // pred_check_branch
          %272 = sbr.rel (%p270) target = $region52
        $region51: #{tpu_custom_call.1} parent=39 // pred_region
          %274 = dma.done [#allocation6], 48
        $region52: #{tpu_custom_call.1} parent=39 // pred_fallthru
          _
        // Predicated region
        $region53: #{tpu_custom_call.1} parent=39 // pred_check
          %p275 = pneg %p108
        $region54: #{tpu_custom_call.1} parent=39 // pred_check_branch
          %277 = sbr.rel (%p275) target = $region56
        $region55: #{tpu_custom_call.1} parent=39 // pred_region
          %279 = dma.done [#allocation9], 1024
        $region56: #{tpu_custom_call.1} parent=39 // pred_fallthru
          _
        // Predicated region
        $region57: #{tpu_custom_call.1} parent=39 // pred_check
          %p280 = pneg %p129
        $region58: #{tpu_custom_call.1} parent=39 // pred_check_branch
          %282 = sbr.rel (%p280) target = $region60
        $region59: #{tpu_custom_call.1} parent=39 // pred_region
          %284 = dma.done [#allocation9], 64
        $region60: #{tpu_custom_call.1} parent=39 // pred_fallthru
          _
        %s285 = sand.u32 %s32, 1
        %s286 = scalar_lea.sflag [#allocation3], %s285
        %s287 = sand.u32 %s32, 1
        %s288 = smul.addr %s287, 16
        %s289 = scalar_lea.vmem [#allocation2], %s288
        %p290 = pneg %p45
        %p291 = pneg %p42
        %p292 = pneg %p66
        %p293 = pneg %p63
        %p294 = pneg %p87
        %p295 = pneg %p84
        %p296 = pneg %p108
        %p297 = pneg %p105
        %p298 = pneg %p129
        %p299 = pneg %p126
        %p300 = pneg %p155
        %p301 = pneg %p152
        %s302 = sand.u32 %s142, 1
        %s303 = scalar_lea.sflag [#allocation4], %s302
        %s304 = sand.u32 %s142, 1
        %s305 = smul.addr %s304, 16
        %s306 = scalar_lea.vmem [#allocation11], %s305
        %v308 = vld [vmem:[%s259] sm:$0xff]
        %v309 = vld [vmem:[%s259 + $0x8] sm:$0xff]
        %v310 = vpack.c.bf16 %v309, %v308
        %v311 = vld [vmem:[#allocation5] sm:$0xff]
        %v312 = vld [vmem:[#allocation5 + $0x8] sm:$0xf]
        %v313 = vld [vmem:[#allocation5 + $0xc] sm:$0xff]
        %v314 = vld [vmem:[#allocation5 + $0x14] sm:$0xf]
        %v315 = vld [vmem:[#allocation5 + $0x18] sm:$0xff]
        %v316 = vld [vmem:[#allocation5 + $0x20] sm:$0xf]
        %v317 = vld [vmem:[#allocation5 + $0x24] sm:$0xff]
        %v318 = vld [vmem:[#allocation5 + $0x2c] sm:$0xf]
        %v319 = vld [vmem:[#allocation5 + $0x30] sm:$0xff]
        %v320 = vld [vmem:[#allocation5 + $0x38] sm:$0xf]
        %v321 = vld [vmem:[#allocation5 + $0x3c] sm:$0xff]
        %v322 = vld [vmem:[#allocation5 + $0x44] sm:$0xf]
        %v323 = vld [vmem:[#allocation5 + $0x48] sm:$0xff]
        %v324 = vld [vmem:[#allocation5 + $0x50] sm:$0xf]
        %v325 = vld [vmem:[#allocation5 + $0x54] sm:$0xff]
        %v326 = vld [vmem:[#allocation5 + $0x5c] sm:$0xf]
        %v327 = vld [vmem:[#allocation5 + $0x60] sm:$0xff]
        %v328 = vld [vmem:[#allocation5 + $0x68] sm:$0xf]
        %v329 = vld [vmem:[#allocation5 + $0x6c] sm:$0xff]
        %v330 = vld [vmem:[#allocation5 + $0x74] sm:$0xf]
        %v331 = vld [vmem:[#allocation5 + $0x78] sm:$0xff]
        %v332 = vld [vmem:[#allocation5 + $0x80] sm:$0xf]
        %v333 = vld [vmem:[#allocation5 + $0x84] sm:$0xff]
        %v334 = vld [vmem:[#allocation5 + $0x8c] sm:$0xf]
        %v335 = vld [vmem:[#allocation5 + $0x90] sm:$0xff]
        %v336 = vld [vmem:[#allocation5 + $0x98] sm:$0xf]
        %v337 = vld [vmem:[#allocation5 + $0x9c] sm:$0xff]
        %v338 = vld [vmem:[#allocation5 + $0xa4] sm:$0xf]
        %v339 = vld [vmem:[#allocation5 + $0xa8] sm:$0xff]
        %v340 = vld [vmem:[#allocation5 + $0xb0] sm:$0xf]
        %v341 = vld [vmem:[#allocation5 + $0xb4] sm:$0xff]
        %v342 = vld [vmem:[#allocation5 + $0xbc] sm:$0xf]
        %v343 = vld [vmem:[#allocation7] sm:$0x7]
        %v345 = vperm.slane %v343, 0
        %v346 = vperm.slane %v343, 1
        %v347 = vperm.slane %v343, 2
        %v383 = vunpack.c.l.b16 %v311
        %v384 = vunpack.c.h.b16 %v311
        %v385 = vunpack.c.l.b16 %v312
        %v386 = vunpack.c.l.b16 %v313
        %v387 = vunpack.c.h.b16 %v313
        %v388 = vunpack.c.l.b16 %v314
        %v389 = vunpack.c.l.b16 %v315
        %v390 = vunpack.c.h.b16 %v315
        %v391 = vunpack.c.l.b16 %v316
        %v392 = vunpack.c.l.b16 %v317
        %v393 = vunpack.c.h.b16 %v317
        %v394 = vunpack.c.l.b16 %v318
        %v395 = vunpack.c.l.b16 %v319
        %v396 = vunpack.c.h.b16 %v319
        %v397 = vunpack.c.l.b16 %v320
        %v398 = vunpack.c.l.b16 %v321
        %v399 = vunpack.c.h.b16 %v321
        %v400 = vunpack.c.l.b16 %v322
        %v401 = vunpack.c.l.b16 %v323
        %v402 = vunpack.c.h.b16 %v323
        %v403 = vunpack.c.l.b16 %v324
        %v404 = vunpack.c.l.b16 %v325
        %v405 = vunpack.c.h.b16 %v325
        %v406 = vunpack.c.l.b16 %v326
        %v407 = vunpack.c.l.b16 %v327
        %v408 = vunpack.c.h.b16 %v327
        %v409 = vunpack.c.l.b16 %v328
        %v410 = vunpack.c.l.b16 %v329
        %v411 = vunpack.c.h.b16 %v329
        %v412 = vunpack.c.l.b16 %v330
        %v413 = vunpack.c.l.b16 %v331
        %v414 = vunpack.c.h.b16 %v331
        %v415 = vunpack.c.l.b16 %v332
        %v416 = vunpack.c.l.b16 %v333
        %v417 = vunpack.c.h.b16 %v333
        %v418 = vunpack.c.l.b16 %v334
        %v419 = vunpack.c.l.b16 %v335
        %v420 = vunpack.c.h.b16 %v335
        %v421 = vunpack.c.l.b16 %v336
        %v422 = vunpack.c.l.b16 %v337
        %v423 = vunpack.c.h.b16 %v337
        %v424 = vunpack.c.l.b16 %v338
        %v425 = vunpack.c.l.b16 %v339
        %v426 = vunpack.c.h.b16 %v339
        %v427 = vunpack.c.l.b16 %v340
        %v428 = vunpack.c.l.b16 %v341
        %v429 = vunpack.c.h.b16 %v341
        %v430 = vunpack.c.l.b16 %v342
        %v431 = vpack.c.b16 %v386, %v383
        %v432 = vpack.c.b16 %v387, %v384
        %v433 = vpack.c.b16 %v388, %v385
        %v434 = vpack.c.b16 %v392, %v389
        %v435 = vpack.c.b16 %v393, %v390
        %v436 = vpack.c.b16 %v394, %v391
        %v437 = vpack.c.b16 %v398, %v395
        %v438 = vpack.c.b16 %v399, %v396
        %v439 = vpack.c.b16 %v400, %v397
        %v440 = vpack.c.b16 %v404, %v401
        %v441 = vpack.c.b16 %v405, %v402
        %v442 = vpack.c.b16 %v406, %v403
        %v443 = vpack.c.b16 %v410, %v407
        %v444 = vpack.c.b16 %v411, %v408
        %v445 = vpack.c.b16 %v412, %v409
        %v446 = vpack.c.b16 %v416, %v413
        %v447 = vpack.c.b16 %v417, %v414
        %v448 = vpack.c.b16 %v418, %v415
        %v449 = vpack.c.b16 %v422, %v419
        %v450 = vpack.c.b16 %v423, %v420
        %v451 = vpack.c.b16 %v424, %v421
        %v452 = vpack.c.b16 %v428, %v425
        %v453 = vpack.c.b16 %v429, %v426
        %v454 = vpack.c.b16 %v430, %v427
        %479 = vmatpush.bf16.msra.mxu0 %v452
        %480 = vmatpush.bf16.msra.mxu0 %v449
        %481 = vmatpush.bf16.msra.mxu0 %v446
        %482 = vmatpush.bf16.msra.mxu0 %v443
        %483 = vmatpush.bf16.msra.mxu0 %v440
        %484 = vmatpush.bf16.msra.mxu0 %v437
        %485 = vmatpush.bf16.msra.mxu0 %v434
        %486 = vmatpush.bf16.msra.mxu0 %v431
        %487 = vmatmul.bf16.gmra.mxu0 %v310
        %v488 = vpop.f32.mrf.mxu0
        %v489 = vadd.f32 %v345, %v488
        %v490 = vpop.f32.mrf.mxu0
        %v491 = vadd.f32 %v345, %v490
        %492 = vdwg.mxu0
        %493 = vmatpush.bf16.msra.mxu0 %v453
        %494 = vmatpush.bf16.msra.mxu0 %v450
        %495 = vmatpush.bf16.msra.mxu0 %v447
        %496 = vmatpush.bf16.msra.mxu0 %v444
        %497 = vmatpush.bf16.msra.mxu0 %v441
        %498 = vmatpush.bf16.msra.mxu0 %v438
        %499 = vmatpush.bf16.msra.mxu0 %v435
        %500 = vmatpush.bf16.msra.mxu0 %v432
        %501 = vmatmul.bf16.gmra.mxu0 %v310
        %v502 = vpop.f32.mrf.mxu0
        %v503 = vadd.f32 %v346, %v502
        %v504 = vpop.f32.mrf.mxu0
        %v505 = vadd.f32 %v346, %v504
        %506 = vdwg.mxu0
        %507 = vmatpush.bf16.msra.mxu0 %v454
        %508 = vmatpush.bf16.msra.mxu0 %v451
        %509 = vmatpush.bf16.msra.mxu0 %v448
        %510 = vmatpush.bf16.msra.mxu0 %v445
        %511 = vmatpush.bf16.msra.mxu0 %v442
        %512 = vmatpush.bf16.msra.mxu0 %v439
        %513 = vmatpush.bf16.msra.mxu0 %v436
        %514 = vmatpush.bf16.msra.mxu0 %v433
        %515 = vmatmul.bf16.gmra.mxu0 %v310
        %v516 = vpop.f32.mrf.mxu0
        %v517 = vadd.f32 %v347, %v516
        %v518 = vpop.f32.mrf.mxu0
        %v519 = vadd.f32 %v347, %v518
        %520 = vdwg.mxu0
        %v521 = vpack.c.bf16 %v489, %v489
        %v522 = vpack.c.bf16 %v491, %v491
        %525 = vrot.lane.b32.xlu0 %v521, 112
        %v526 = vpop.permute.xlu0 %525
        %527 = vrot.lane.b32.xlu0 %v522, 112
        %v528 = vpop.permute.xlu0 %527
        %529 = vrot.lane.b32.xlu0 %v521, 96
        %v530 = vpop.permute.xlu0 %529
        %531 = vrot.lane.b32.xlu0 %v522, 96
        %v532 = vpop.permute.xlu0 %531
        %533 = vrot.lane.b32.xlu0 %v521, 80
        %v534 = vpop.permute.xlu0 %533
        %535 = vrot.lane.b32.xlu0 %v522, 80
        %v536 = vpop.permute.xlu0 %535
        %537 = vrot.lane.b32.xlu0 %v521, 64
        %v538 = vpop.permute.xlu0 %537
        %539 = vrot.lane.b32.xlu0 %v522, 64
        %v540 = vpop.permute.xlu0 %539
        %541 = vrot.lane.b32.xlu0 %v521, 48
        %v542 = vpop.permute.xlu0 %541
        %543 = vrot.lane.b32.xlu0 %v522, 48
        %v544 = vpop.permute.xlu0 %543
        %545 = vrot.lane.b32.xlu0 %v521, 32
        %v546 = vpop.permute.xlu0 %545
        %547 = vrot.lane.b32.xlu0 %v522, 32
        %v548 = vpop.permute.xlu0 %547
        %549 = vrot.lane.b32.xlu0 %v521, 16
        %v550 = vpop.permute.xlu0 %549
        %551 = vrot.lane.b32.xlu0 %v522, 16
        %v552 = vpop.permute.xlu0 %551
        %v553 = vpack.c.bf16 %v503, %v503
        %v554 = vpack.c.bf16 %v505, %v505
        %557 = vrot.lane.b32.xlu0 %v553, 112
        %v558 = vpop.permute.xlu0 %557
        %559 = vrot.lane.b32.xlu0 %v554, 112
        %v560 = vpop.permute.xlu0 %559
        %561 = vrot.lane.b32.xlu0 %v553, 96
        %v562 = vpop.permute.xlu0 %561
        %563 = vrot.lane.b32.xlu0 %v554, 96
        %v564 = vpop.permute.xlu0 %563
        %565 = vrot.lane.b32.xlu0 %v553, 80
        %v566 = vpop.permute.xlu0 %565
        %567 = vrot.lane.b32.xlu0 %v554, 80
        %v568 = vpop.permute.xlu0 %567
        %569 = vrot.lane.b32.xlu0 %v553, 64
        %v570 = vpop.permute.xlu0 %569
        %571 = vrot.lane.b32.xlu0 %v554, 64
        %v572 = vpop.permute.xlu0 %571
        %573 = vrot.lane.b32.xlu0 %v553, 48
        %v574 = vpop.permute.xlu0 %573
        %575 = vrot.lane.b32.xlu0 %v554, 48
        %v576 = vpop.permute.xlu0 %575
        %577 = vrot.lane.b32.xlu0 %v553, 32
        %v578 = vpop.permute.xlu0 %577
        %579 = vrot.lane.b32.xlu0 %v554, 32
        %v580 = vpop.permute.xlu0 %579
        %581 = vrot.lane.b32.xlu0 %v553, 16
        %v582 = vpop.permute.xlu0 %581
        %583 = vrot.lane.b32.xlu0 %v554, 16
        %v584 = vpop.permute.xlu0 %583
        %v585 = vpack.c.bf16 %v517, %v517
        %v586 = vpack.c.bf16 %v519, %v519
        %589 = vrot.lane.b32.xlu0 %v585, 112
        %v590 = vpop.permute.xlu0 %589
        %591 = vrot.lane.b32.xlu0 %v586, 112
        %v592 = vpop.permute.xlu0 %591
        %593 = vrot.lane.b32.xlu0 %v585, 96
        %v594 = vpop.permute.xlu0 %593
        %595 = vrot.lane.b32.xlu0 %v586, 96
        %v596 = vpop.permute.xlu0 %595
        %597 = vrot.lane.b32.xlu0 %v585, 80
        %v598 = vpop.permute.xlu0 %597
        %599 = vrot.lane.b32.xlu0 %v586, 80
        %v600 = vpop.permute.xlu0 %599
        %601 = vrot.lane.b32.xlu0 %v585, 64
        %v602 = vpop.permute.xlu0 %601
        %603 = vrot.lane.b32.xlu0 %v586, 64
        %v604 = vpop.permute.xlu0 %603
        %605 = vrot.lane.b32.xlu0 %v585, 48
        %v606 = vpop.permute.xlu0 %605
        %607 = vrot.lane.b32.xlu0 %v586, 48
        %v608 = vpop.permute.xlu0 %607
        %609 = vrot.lane.b32.xlu0 %v585, 32
        %v610 = vpop.permute.xlu0 %609
        %611 = vrot.lane.b32.xlu0 %v586, 32
        %v612 = vpop.permute.xlu0 %611
        %613 = vrot.lane.b32.xlu0 %v585, 16
        %v614 = vpop.permute.xlu0 %613
        %615 = vrot.lane.b32.xlu0 %v586, 16
        %v616 = vpop.permute.xlu0 %615
        %v617 = vunpack.c.l.b16 %v521
        %v618 = vunpack.c.l.b16 %v522
        %v619 = vpack.c.b16 %v618, %v617
        %v620 = vunpack.c.l.b16 %v553
        %v621 = vunpack.c.l.b16 %v554
        %v622 = vpack.c.b16 %v621, %v620
        %vm623 = vcmask 130048
        %v625 = vsel %vm623, %v619, 0
        %v628 = vsel %vm623, %v622, 0
        %630 = vmatpush.bf16.xpose.msra.mxu0 0
        %631 = vmatpush.bf16.xpose.msra.mxu0 0
        %632 = vmatpush.bf16.xpose.msra.mxu0 0
        %633 = vmatpush.bf16.xpose.msra.mxu0 0
        %634 = vmatpush.bf16.xpose.msra.mxu0 0
        %635 = vmatpush.bf16.xpose.msra.mxu0 0
        %636 = vmatpush.bf16.xpose.msra.mxu0 0
        %637 = vmatpush.bf16.xpose.msra.mxu0 %v628
        %638 = vmatmul.bf16.gmra.mxu0 %v625
        %v639 = vpop.f32.mrf.mxu0
        %v640 = vadd.f32 0.0, %v639
        %v641 = vpop.f32.mrf.mxu0
        %v642 = vadd.f32 0.0, %v641
        %643 = vdwg.mxu0
        %v644 = vunpack.c.l.b16 %v526
        %v645 = vunpack.c.l.b16 %v528
        %v646 = vpack.c.b16 %v645, %v644
        %v647 = vunpack.c.l.b16 %v558
        %v648 = vunpack.c.l.b16 %v560
        %v649 = vpack.c.b16 %v648, %v647
        %v651 = vsel %vm623, %v646, 0
        %v654 = vsel %vm623, %v649, 0
        %656 = vmatpush.bf16.xpose.msra.mxu0 0
        %657 = vmatpush.bf16.xpose.msra.mxu0 0
        %658 = vmatpush.bf16.xpose.msra.mxu0 0
        %659 = vmatpush.bf16.xpose.msra.mxu0 0
        %660 = vmatpush.bf16.xpose.msra.mxu0 0
        %661 = vmatpush.bf16.xpose.msra.mxu0 0
        %662 = vmatpush.bf16.xpose.msra.mxu0 0
        %663 = vmatpush.bf16.xpose.msra.mxu0 %v654
        %664 = vmatmul.bf16.gmra.mxu0 %v651
        %v665 = vpop.f32.mrf.mxu0
        %v666 = vadd.f32 0.0, %v665
        %v667 = vpop.f32.mrf.mxu0
        %v668 = vadd.f32 0.0, %v667
        %669 = vdwg.mxu0
        %v670 = vunpack.c.l.b16 %v530
        %v671 = vunpack.c.l.b16 %v532
        %v672 = vpack.c.b16 %v671, %v670
        %v673 = vunpack.c.l.b16 %v562
        %v674 = vunpack.c.l.b16 %v564
        %v675 = vpack.c.b16 %v674, %v673
        %v677 = vsel %vm623, %v672, 0
        %v680 = vsel %vm623, %v675, 0
        %682 = vmatpush.bf16.xpose.msra.mxu0 0
        %683 = vmatpush.bf16.xpose.msra.mxu0 0
        %684 = vmatpush.bf16.xpose.msra.mxu0 0
        %685 = vmatpush.bf16.xpose.msra.mxu0 0
        %686 = vmatpush.bf16.xpose.msra.mxu0 0
        %687 = vmatpush.bf16.xpose.msra.mxu0 0
        %688 = vmatpush.bf16.xpose.msra.mxu0 0
        %689 = vmatpush.bf16.xpose.msra.mxu0 %v680
        %690 = vmatmul.bf16.gmra.mxu0 %v677
        %v691 = vpop.f32.mrf.mxu0
        %v692 = vadd.f32 0.0, %v691
        %v693 = vpop.f32.mrf.mxu0
        %v694 = vadd.f32 0.0, %v693
        %695 = vdwg.mxu0
        %v696 = vunpack.c.l.b16 %v534
        %v697 = vunpack.c.l.b16 %v536
        %v698 = vpack.c.b16 %v697, %v696
        %v699 = vunpack.c.l.b16 %v566
        %v700 = vunpack.c.l.b16 %v568
        %v701 = vpack.c.b16 %v700, %v699
        %v703 = vsel %vm623, %v698, 0
        %v706 = vsel %vm623, %v701, 0
        %708 = vmatpush.bf16.xpose.msra.mxu0 0
        %709 = vmatpush.bf16.xpose.msra.mxu0 0
        %710 = vmatpush.bf16.xpose.msra.mxu0 0
        %711 = vmatpush.bf16.xpose.msra.mxu0 0
        %712 = vmatpush.bf16.xpose.msra.mxu0 0
        %713 = vmatpush.bf16.xpose.msra.mxu0 0
        %714 = vmatpush.bf16.xpose.msra.mxu0 0
        %715 = vmatpush.bf16.xpose.msra.mxu0 %v706
        %716 = vmatmul.bf16.gmra.mxu0 %v703
        %v717 = vpop.f32.mrf.mxu0
        %v718 = vadd.f32 0.0, %v717
        %v719 = vpop.f32.mrf.mxu0
        %v720 = vadd.f32 0.0, %v719
        %721 = vdwg.mxu0
        %v722 = vunpack.c.l.b16 %v538
        %v723 = vunpack.c.l.b16 %v540
        %v724 = vpack.c.b16 %v723, %v722
        %v725 = vunpack.c.l.b16 %v570
        %v726 = vunpack.c.l.b16 %v572
        %v727 = vpack.c.b16 %v726, %v725
        %v729 = vsel %vm623, %v724, 0
        %v732 = vsel %vm623, %v727, 0
        %734 = vmatpush.bf16.xpose.msra.mxu0 0
        %735 = vmatpush.bf16.xpose.msra.mxu0 0
        %736 = vmatpush.bf16.xpose.msra.mxu0 0
        %737 = vmatpush.bf16.xpose.msra.mxu0 0
        %738 = vmatpush.bf16.xpose.msra.mxu0 0
        %739 = vmatpush.bf16.xpose.msra.mxu0 0
        %740 = vmatpush.bf16.xpose.msra.mxu0 0
        %741 = vmatpush.bf16.xpose.msra.mxu0 %v732
        %742 = vmatmul.bf16.gmra.mxu0 %v729
        %v743 = vpop.f32.mrf.mxu0
        %v744 = vadd.f32 0.0, %v743
        %v745 = vpop.f32.mrf.mxu0
        %v746 = vadd.f32 0.0, %v745
        %747 = vdwg.mxu0
        %v748 = vunpack.c.l.b16 %v542
        %v749 = vunpack.c.l.b16 %v544
        %v750 = vpack.c.b16 %v749, %v748
        %v751 = vunpack.c.l.b16 %v574
        %v752 = vunpack.c.l.b16 %v576
        %v753 = vpack.c.b16 %v752, %v751
        %v755 = vsel %vm623, %v750, 0
        %v758 = vsel %vm623, %v753, 0
        %760 = vmatpush.bf16.xpose.msra.mxu0 0
        %761 = vmatpush.bf16.xpose.msra.mxu0 0
        %762 = vmatpush.bf16.xpose.msra.mxu0 0
        %763 = vmatpush.bf16.xpose.msra.mxu0 0
        %764 = vmatpush.bf16.xpose.msra.mxu0 0
        %765 = vmatpush.bf16.xpose.msra.mxu0 0
        %766 = vmatpush.bf16.xpose.msra.mxu0 0
        %767 = vmatpush.bf16.xpose.msra.mxu0 %v758
        %768 = vmatmul.bf16.gmra.mxu0 %v755
        %v769 = vpop.f32.mrf.mxu0
        %v770 = vadd.f32 0.0, %v769
        %v771 = vpop.f32.mrf.mxu0
        %v772 = vadd.f32 0.0, %v771
        %773 = vdwg.mxu0
        %v774 = vunpack.c.l.b16 %v546
        %v775 = vunpack.c.l.b16 %v548
        %v776 = vpack.c.b16 %v775, %v774
        %v777 = vunpack.c.l.b16 %v578
        %v778 = vunpack.c.l.b16 %v580
        %v779 = vpack.c.b16 %v778, %v777
        %v781 = vsel %vm623, %v776, 0
        %v784 = vsel %vm623, %v779, 0
        %786 = vmatpush.bf16.xpose.msra.mxu0 0
        %787 = vmatpush.bf16.xpose.msra.mxu0 0
        %788 = vmatpush.bf16.xpose.msra.mxu0 0
        %789 = vmatpush.bf16.xpose.msra.mxu0 0
        %790 = vmatpush.bf16.xpose.msra.mxu0 0
        %791 = vmatpush.bf16.xpose.msra.mxu0 0
        %792 = vmatpush.bf16.xpose.msra.mxu0 0
        %793 = vmatpush.bf16.xpose.msra.mxu0 %v784
        %794 = vmatmul.bf16.gmra.mxu0 %v781
        %v795 = vpop.f32.mrf.mxu0
        %v796 = vadd.f32 0.0, %v795
        %v797 = vpop.f32.mrf.mxu0
        %v798 = vadd.f32 0.0, %v797
        %799 = vdwg.mxu0
        %v800 = vunpack.c.l.b16 %v550
        %v801 = vunpack.c.l.b16 %v552
        %v802 = vpack.c.b16 %v801, %v800
        %v803 = vunpack.c.l.b16 %v582
        %v804 = vunpack.c.l.b16 %v584
        %v805 = vpack.c.b16 %v804, %v803
        %v807 = vsel %vm623, %v802, 0
        %v810 = vsel %vm623, %v805, 0
        %812 = vmatpush.bf16.xpose.msra.mxu0 0
        %813 = vmatpush.bf16.xpose.msra.mxu0 0
        %814 = vmatpush.bf16.xpose.msra.mxu0 0
        %815 = vmatpush.bf16.xpose.msra.mxu0 0
        %816 = vmatpush.bf16.xpose.msra.mxu0 0
        %817 = vmatpush.bf16.xpose.msra.mxu0 0
        %818 = vmatpush.bf16.xpose.msra.mxu0 0
        %819 = vmatpush.bf16.xpose.msra.mxu0 %v810
        %820 = vmatmul.bf16.gmra.mxu0 %v807
        %v821 = vpop.f32.mrf.mxu0
        %v822 = vadd.f32 0.0, %v821
        %v823 = vpop.f32.mrf.mxu0
        %v824 = vadd.f32 0.0, %v823
        %825 = vdwg.mxu0
        %v826 = vsel %vm623, %v640, -inf
        %827 = vmax.xlane.f32.xlu0 %v826
        %v828 = vpop.xlane.xlu0 %827
        %v829 = vsel %vm623, %v642, -inf
        %830 = vmax.xlane.f32.xlu0 %v829
        %v831 = vpop.xlane.xlu0 %830
        %v832 = vsel %vm623, %v666, -inf
        %833 = vmax.xlane.f32.xlu0 %v832
        %v834 = vpop.xlane.xlu0 %833
        %v835 = vsel %vm623, %v668, -inf
        %836 = vmax.xlane.f32.xlu0 %v835
        %v837 = vpop.xlane.xlu0 %836
        %v838 = vsel %vm623, %v692, -inf
        %839 = vmax.xlane.f32.xlu0 %v838
        %v840 = vpop.xlane.xlu0 %839
        %v841 = vsel %vm623, %v694, -inf
        %842 = vmax.xlane.f32.xlu0 %v841
        %v843 = vpop.xlane.xlu0 %842
        %v844 = vsel %vm623, %v718, -inf
        %845 = vmax.xlane.f32.xlu0 %v844
        %v846 = vpop.xlane.xlu0 %845
        %v847 = vsel %vm623, %v720, -inf
        %848 = vmax.xlane.f32.xlu0 %v847
        %v849 = vpop.xlane.xlu0 %848
        %v850 = vsel %vm623, %v744, -inf
        %851 = vmax.xlane.f32.xlu0 %v850
        %v852 = vpop.xlane.xlu0 %851
        %v853 = vsel %vm623, %v746, -inf
        %854 = vmax.xlane.f32.xlu0 %v853
        %v855 = vpop.xlane.xlu0 %854
        %v856 = vsel %vm623, %v770, -inf
        %857 = vmax.xlane.f32.xlu0 %v856
        %v858 = vpop.xlane.xlu0 %857
        %v859 = vsel %vm623, %v772, -inf
        %860 = vmax.xlane.f32.xlu0 %v859
        %v861 = vpop.xlane.xlu0 %860
        %v862 = vsel %vm623, %v796, -inf
        %863 = vmax.xlane.f32.xlu0 %v862
        %v864 = vpop.xlane.xlu0 %863
        %v865 = vsel %vm623, %v798, -inf
        %866 = vmax.xlane.f32.xlu0 %v865
        %v867 = vpop.xlane.xlu0 %866
        %v868 = vsel %vm623, %v822, -inf
        %869 = vmax.xlane.f32.xlu0 %v868
        %v870 = vpop.xlane.xlu0 %869
        %v871 = vsel %vm623, %v824, -inf
        %872 = vmax.xlane.f32.xlu0 %v871
        %v873 = vpop.xlane.xlu0 %872
        %v874 = vsub.f32 %v640, %v828
        %v875 = vsub.f32 %v642, %v831
        %v876 = vsub.f32 %v666, %v834
        %v877 = vsub.f32 %v668, %v837
        %v878 = vsub.f32 %v692, %v840
        %v879 = vsub.f32 %v694, %v843
        %v880 = vsub.f32 %v718, %v846
        %v881 = vsub.f32 %v720, %v849
        %v882 = vsub.f32 %v744, %v852
        %v883 = vsub.f32 %v746, %v855
        %v884 = vsub.f32 %v770, %v858
        %v885 = vsub.f32 %v772, %v861
        %v886 = vsub.f32 %v796, %v864
        %v887 = vsub.f32 %v798, %v867
        %v888 = vsub.f32 %v822, %v870
        %v889 = vsub.f32 %v824, %v873
        %v890 = vmul.f32 %v874, 1.442695
        %v891 = vpow.pop %v890
        %v892 = vmul.f32 %v875, 1.442695
        %v893 = vpow.pop %v892
        %v894 = vmul.f32 %v876, 1.442695
        %v895 = vpow.pop %v894
        %v896 = vmul.f32 %v877, 1.442695
        %v897 = vpow.pop %v896
        %v898 = vmul.f32 %v878, 1.442695
        %v899 = vpow.pop %v898
        %v900 = vmul.f32 %v879, 1.442695
        %v901 = vpow.pop %v900
        %v902 = vmul.f32 %v880, 1.442695
        %v903 = vpow.pop %v902
        %v904 = vmul.f32 %v881, 1.442695
        %v905 = vpow.pop %v904
        %v906 = vmul.f32 %v882, 1.442695
        %v907 = vpow.pop %v906
        %v908 = vmul.f32 %v883, 1.442695
        %v909 = vpow.pop %v908
        %v910 = vmul.f32 %v884, 1.442695
        %v911 = vpow.pop %v910
        %v912 = vmul.f32 %v885, 1.442695
        %v913 = vpow.pop %v912
        %v914 = vmul.f32 %v886, 1.442695
        %v915 = vpow.pop %v914
        %v916 = vmul.f32 %v887, 1.442695
        %v917 = vpow.pop %v916
        %v918 = vmul.f32 %v888, 1.442695
        %v919 = vpow.pop %v918
        %v920 = vmul.f32 %v889, 1.442695
        %v921 = vpow.pop %v920
        %v922 = vsel %vm623, %v891, 0.0
        %923 = vadd.xlane.f32.xlu0 %v922
        %v924 = vpop.xlane.xlu0 %923
        %v925 = vsel %vm623, %v893, 0.0
        %926 = vadd.xlane.f32.xlu0 %v925
        %v927 = vpop.xlane.xlu0 %926
        %v928 = vsel %vm623, %v895, 0.0
        %929 = vadd.xlane.f32.xlu0 %v928
        %v930 = vpop.xlane.xlu0 %929
        %v931 = vsel %vm623, %v897, 0.0
        %932 = vadd.xlane.f32.xlu0 %v931
        %v933 = vpop.xlane.xlu0 %932
        %v934 = vsel %vm623, %v899, 0.0
        %935 = vadd.xlane.f32.xlu0 %v934
        %v936 = vpop.xlane.xlu0 %935
        %v937 = vsel %vm623, %v901, 0.0
        %938 = vadd.xlane.f32.xlu0 %v937
        %v939 = vpop.xlane.xlu0 %938
        %v940 = vsel %vm623, %v903, 0.0
        %941 = vadd.xlane.f32.xlu0 %v940
        %v942 = vpop.xlane.xlu0 %941
        %v943 = vsel %vm623, %v905, 0.0
        %944 = vadd.xlane.f32.xlu0 %v943
        %v945 = vpop.xlane.xlu0 %944
        %v946 = vsel %vm623, %v907, 0.0
        %947 = vadd.xlane.f32.xlu0 %v946
        %v948 = vpop.xlane.xlu0 %947
        %v949 = vsel %vm623, %v909, 0.0
        %950 = vadd.xlane.f32.xlu0 %v949
        %v951 = vpop.xlane.xlu0 %950
        %v952 = vsel %vm623, %v911, 0.0
        %953 = vadd.xlane.f32.xlu0 %v952
        %v954 = vpop.xlane.xlu0 %953
        %v955 = vsel %vm623, %v913, 0.0
        %956 = vadd.xlane.f32.xlu0 %v955
        %v957 = vpop.xlane.xlu0 %956
        %v958 = vsel %vm623, %v915, 0.0
        %959 = vadd.xlane.f32.xlu0 %v958
        %v960 = vpop.xlane.xlu0 %959
        %v961 = vsel %vm623, %v917, 0.0
        %962 = vadd.xlane.f32.xlu0 %v961
        %v963 = vpop.xlane.xlu0 %962
        %v964 = vsel %vm623, %v919, 0.0
        %965 = vadd.xlane.f32.xlu0 %v964
        %v966 = vpop.xlane.xlu0 %965
        %v967 = vsel %vm623, %v921, 0.0
        %968 = vadd.xlane.f32.xlu0 %v967
        %v969 = vpop.xlane.xlu0 %968
        %v970 = vrcp.pop %v924
        %v971 = vrcp.pop %v927
        %v972 = vrcp.pop %v930
        %v973 = vrcp.pop %v933
        %v974 = vrcp.pop %v936
        %v975 = vrcp.pop %v939
        %v976 = vrcp.pop %v942
        %v977 = vrcp.pop %v945
        %v978 = vrcp.pop %v948
        %v979 = vrcp.pop %v951
        %v980 = vrcp.pop %v954
        %v981 = vrcp.pop %v957
        %v982 = vrcp.pop %v960
        %v983 = vrcp.pop %v963
        %v984 = vrcp.pop %v966
        %v985 = vrcp.pop %v969
        %v986 = vmul.f32 %v891, %v970
        %v987 = vmul.f32 %v893, %v971
        %v988 = vmul.f32 %v895, %v972
        %v989 = vmul.f32 %v897, %v973
        %v990 = vmul.f32 %v899, %v974
        %v991 = vmul.f32 %v901, %v975
        %v992 = vmul.f32 %v903, %v976
        %v993 = vmul.f32 %v905, %v977
        %v994 = vmul.f32 %v907, %v978
        %v995 = vmul.f32 %v909, %v979
        %v996 = vmul.f32 %v911, %v980
        %v997 = vmul.f32 %v913, %v981
        %v998 = vmul.f32 %v915, %v982
        %v999 = vmul.f32 %v917, %v983
        %v1000 = vmul.f32 %v919, %v984
        %v1001 = vmul.f32 %v921, %v985
        %v1002 = vpack.c.bf16 %v986, %v986
        %v1003 = vpack.c.bf16 %v987, %v987
        %v1004 = vpack.c.bf16 %v988, %v988
        %v1005 = vpack.c.bf16 %v989, %v989
        %v1006 = vpack.c.bf16 %v990, %v990
        %v1007 = vpack.c.bf16 %v991, %v991
        %v1008 = vpack.c.bf16 %v992, %v992
        %v1009 = vpack.c.bf16 %v993, %v993
        %v1010 = vpack.c.bf16 %v994, %v994
        %v1011 = vpack.c.bf16 %v995, %v995
        %v1012 = vpack.c.bf16 %v996, %v996
        %v1013 = vpack.c.bf16 %v997, %v997
        %v1014 = vpack.c.bf16 %v998, %v998
        %v1015 = vpack.c.bf16 %v999, %v999
        %v1016 = vpack.c.bf16 %v1000, %v1000
        %v1017 = vpack.c.bf16 %v1001, %v1001
        %v1020 = vunpack.c.l.b16 %v1002
        %v1021 = vunpack.c.l.b16 %v1003
        %v1022 = vpack.c.b16 %v1021, %v1020
        %v1023 = vunpack.c.l.b16 %v585
        %v1024 = vunpack.c.l.b16 %v586
        %v1025 = vpack.c.b16 %v1024, %v1023
        %v1028 = vsel %vm623, %v1022, 0
        %1030 = vmatpush.bf16.msra.mxu0 0
        %1031 = vmatpush.bf16.msra.mxu0 0
        %1032 = vmatpush.bf16.msra.mxu0 0
        %1033 = vmatpush.bf16.msra.mxu0 0
        %1034 = vmatpush.bf16.msra.mxu0 0
        %1035 = vmatpush.bf16.msra.mxu0 0
        %1036 = vmatpush.bf16.msra.mxu0 0
        %1037 = vmatpush.bf16.msra.mxu0 %v1025
        %1038 = vmatmul.bf16.gmra.mxu0 %v1028
        %v1039 = vpop.f32.mrf.mxu0
        %v1040 = vadd.f32 0.0, %v1039
        %v1041 = vpop.f32.mrf.mxu0
        %v1042 = vadd.f32 0.0, %v1041
        %1043 = vdwg.mxu0
        %v1046 = vunpack.c.l.b16 %v1004
        %v1047 = vunpack.c.l.b16 %v1005
        %v1048 = vpack.c.b16 %v1047, %v1046
        %v1049 = vunpack.c.l.b16 %v590
        %v1050 = vunpack.c.l.b16 %v592
        %v1051 = vpack.c.b16 %v1050, %v1049
        %v1054 = vsel %vm623, %v1048, 0
        %1056 = vmatpush.bf16.msra.mxu0 0
        %1057 = vmatpush.bf16.msra.mxu0 0
        %1058 = vmatpush.bf16.msra.mxu0 0
        %1059 = vmatpush.bf16.msra.mxu0 0
        %1060 = vmatpush.bf16.msra.mxu0 0
        %1061 = vmatpush.bf16.msra.mxu0 0
        %1062 = vmatpush.bf16.msra.mxu0 0
        %1063 = vmatpush.bf16.msra.mxu0 %v1051
        %1064 = vmatmul.bf16.gmra.mxu0 %v1054
        %v1065 = vpop.f32.mrf.mxu0
        %v1066 = vadd.f32 0.0, %v1065
        %v1067 = vpop.f32.mrf.mxu0
        %v1068 = vadd.f32 0.0, %v1067
        %1069 = vdwg.mxu0
        %v1072 = vunpack.c.l.b16 %v1006
        %v1073 = vunpack.c.l.b16 %v1007
        %v1074 = vpack.c.b16 %v1073, %v1072
        %v1075 = vunpack.c.l.b16 %v594
        %v1076 = vunpack.c.l.b16 %v596
        %v1077 = vpack.c.b16 %v1076, %v1075
        %v1080 = vsel %vm623, %v1074, 0
        %1082 = vmatpush.bf16.msra.mxu0 0
        %1083 = vmatpush.bf16.msra.mxu0 0
        %1084 = vmatpush.bf16.msra.mxu0 0
        %1085 = vmatpush.bf16.msra.mxu0 0
        %1086 = vmatpush.bf16.msra.mxu0 0
        %1087 = vmatpush.bf16.msra.mxu0 0
        %1088 = vmatpush.bf16.msra.mxu0 0
        %1089 = vmatpush.bf16.msra.mxu0 %v1077
        %1090 = vmatmul.bf16.gmra.mxu0 %v1080
        %v1091 = vpop.f32.mrf.mxu0
        %v1092 = vadd.f32 0.0, %v1091
        %v1093 = vpop.f32.mrf.mxu0
        %v1094 = vadd.f32 0.0, %v1093
        %1095 = vdwg.mxu0
        %v1098 = vunpack.c.l.b16 %v1008
        %v1099 = vunpack.c.l.b16 %v1009
        %v1100 = vpack.c.b16 %v1099, %v1098
        %v1101 = vunpack.c.l.b16 %v598
        %v1102 = vunpack.c.l.b16 %v600
        %v1103 = vpack.c.b16 %v1102, %v1101
        %v1106 = vsel %vm623, %v1100, 0
        %1108 = vmatpush.bf16.msra.mxu0 0
        %1109 = vmatpush.bf16.msra.mxu0 0
        %1110 = vmatpush.bf16.msra.mxu0 0
        %1111 = vmatpush.bf16.msra.mxu0 0
        %1112 = vmatpush.bf16.msra.mxu0 0
        %1113 = vmatpush.bf16.msra.mxu0 0
        %1114 = vmatpush.bf16.msra.mxu0 0
        %1115 = vmatpush.bf16.msra.mxu0 %v1103
        %1116 = vmatmul.bf16.gmra.mxu0 %v1106
        %v1117 = vpop.f32.mrf.mxu0
        %v1118 = vadd.f32 0.0, %v1117
        %v1119 = vpop.f32.mrf.mxu0
        %v1120 = vadd.f32 0.0, %v1119
        %1121 = vdwg.mxu0
        %v1124 = vunpack.c.l.b16 %v1010
        %v1125 = vunpack.c.l.b16 %v1011
        %v1126 = vpack.c.b16 %v1125, %v1124
        %v1127 = vunpack.c.l.b16 %v602
        %v1128 = vunpack.c.l.b16 %v604
        %v1129 = vpack.c.b16 %v1128, %v1127
        %v1132 = vsel %vm623, %v1126, 0
        %1134 = vmatpush.bf16.msra.mxu0 0
        %1135 = vmatpush.bf16.msra.mxu0 0
        %1136 = vmatpush.bf16.msra.mxu0 0
        %1137 = vmatpush.bf16.msra.mxu0 0
        %1138 = vmatpush.bf16.msra.mxu0 0
        %1139 = vmatpush.bf16.msra.mxu0 0
        %1140 = vmatpush.bf16.msra.mxu0 0
        %1141 = vmatpush.bf16.msra.mxu0 %v1129
        %1142 = vmatmul.bf16.gmra.mxu0 %v1132
        %v1143 = vpop.f32.mrf.mxu0
        %v1144 = vadd.f32 0.0, %v1143
        %v1145 = vpop.f32.mrf.mxu0
        %v1146 = vadd.f32 0.0, %v1145
        %1147 = vdwg.mxu0
        %v1150 = vunpack.c.l.b16 %v1012
        %v1151 = vunpack.c.l.b16 %v1013
        %v1152 = vpack.c.b16 %v1151, %v1150
        %v1153 = vunpack.c.l.b16 %v606
        %v1154 = vunpack.c.l.b16 %v608
        %v1155 = vpack.c.b16 %v1154, %v1153
        %v1158 = vsel %vm623, %v1152, 0
        %1160 = vmatpush.bf16.msra.mxu0 0
        %1161 = vmatpush.bf16.msra.mxu0 0
        %1162 = vmatpush.bf16.msra.mxu0 0
        %1163 = vmatpush.bf16.msra.mxu0 0
        %1164 = vmatpush.bf16.msra.mxu0 0
        %1165 = vmatpush.bf16.msra.mxu0 0
        %1166 = vmatpush.bf16.msra.mxu0 0
        %1167 = vmatpush.bf16.msra.mxu0 %v1155
        %1168 = vmatmul.bf16.gmra.mxu0 %v1158
        %v1169 = vpop.f32.mrf.mxu0
        %v1170 = vadd.f32 0.0, %v1169
        %v1171 = vpop.f32.mrf.mxu0
        %v1172 = vadd.f32 0.0, %v1171
        %1173 = vdwg.mxu0
        %v1176 = vunpack.c.l.b16 %v1014
        %v1177 = vunpack.c.l.b16 %v1015
        %v1178 = vpack.c.b16 %v1177, %v1176
        %v1179 = vunpack.c.l.b16 %v610
        %v1180 = vunpack.c.l.b16 %v612
        %v1181 = vpack.c.b16 %v1180, %v1179
        %v1184 = vsel %vm623, %v1178, 0
        %1186 = vmatpush.bf16.msra.mxu0 0
        %1187 = vmatpush.bf16.msra.mxu0 0
        %1188 = vmatpush.bf16.msra.mxu0 0
        %1189 = vmatpush.bf16.msra.mxu0 0
        %1190 = vmatpush.bf16.msra.mxu0 0
        %1191 = vmatpush.bf16.msra.mxu0 0
        %1192 = vmatpush.bf16.msra.mxu0 0
        %1193 = vmatpush.bf16.msra.mxu0 %v1181
        %1194 = vmatmul.bf16.gmra.mxu0 %v1184
        %v1195 = vpop.f32.mrf.mxu0
        %v1196 = vadd.f32 0.0, %v1195
        %v1197 = vpop.f32.mrf.mxu0
        %v1198 = vadd.f32 0.0, %v1197
        %1199 = vdwg.mxu0
        %v1202 = vunpack.c.l.b16 %v1016
        %v1203 = vunpack.c.l.b16 %v1017
        %v1204 = vpack.c.b16 %v1203, %v1202
        %v1205 = vunpack.c.l.b16 %v614
        %v1206 = vunpack.c.l.b16 %v616
        %v1207 = vpack.c.b16 %v1206, %v1205
        %v1210 = vsel %vm623, %v1204, 0
        %1212 = vmatpush.bf16.msra.mxu0 0
        %1213 = vmatpush.bf16.msra.mxu0 0
        %1214 = vmatpush.bf16.msra.mxu0 0
        %1215 = vmatpush.bf16.msra.mxu0 0
        %1216 = vmatpush.bf16.msra.mxu0 0
        %1217 = vmatpush.bf16.msra.mxu0 0
        %1218 = vmatpush.bf16.msra.mxu0 0
        %1219 = vmatpush.bf16.msra.mxu0 %v1207
        %1220 = vmatmul.bf16.gmra.mxu0 %v1210
        %v1221 = vpop.f32.mrf.mxu0
        %v1222 = vadd.f32 0.0, %v1221
        %v1223 = vpop.f32.mrf.mxu0
        %v1224 = vadd.f32 0.0, %v1223
        %1225 = vdwg.mxu0
        %1228 = vrot.lane.b32.xlu0 %v1066, 16
        %v1229 = vpop.permute.xlu0 %1228
        %1230 = vrot.lane.b32.xlu0 %v1068, 16
        %v1231 = vpop.permute.xlu0 %1230
        %1236 = vrot.lane.b32.xlu0 %v1092, 32
        %v1237 = vpop.permute.xlu0 %1236
        %1238 = vrot.lane.b32.xlu0 %v1094, 32
        %v1239 = vpop.permute.xlu0 %1238
        %1244 = vrot.lane.b32.xlu0 %v1118, 48
        %v1245 = vpop.permute.xlu0 %1244
        %1246 = vrot.lane.b32.xlu0 %v1120, 48
        %v1247 = vpop.permute.xlu0 %1246
        %1252 = vrot.lane.b32.xlu0 %v1144, 64
        %v1253 = vpop.permute.xlu0 %1252
        %1254 = vrot.lane.b32.xlu0 %v1146, 64
        %v1255 = vpop.permute.xlu0 %1254
        %1260 = vrot.lane.b32.xlu0 %v1170, 80
        %v1261 = vpop.permute.xlu0 %1260
        %1262 = vrot.lane.b32.xlu0 %v1172, 80
        %v1263 = vpop.permute.xlu0 %1262
        %1268 = vrot.lane.b32.xlu0 %v1196, 96
        %v1269 = vpop.permute.xlu0 %1268
        %1270 = vrot.lane.b32.xlu0 %v1198, 96
        %v1271 = vpop.permute.xlu0 %1270
        %1276 = vrot.lane.b32.xlu0 %v1222, 112
        %v1277 = vpop.permute.xlu0 %1276
        %1278 = vrot.lane.b32.xlu0 %v1224, 112
        %v1279 = vpop.permute.xlu0 %1278
        %v1282 = vsel %vm623, %v1040, %v1229
        %v1283 = vsel %vm623, %v1042, %v1231
        %vm1284 = vcmask 261120
        %v1285 = vsel %vm1284, %v1282, %v1237
        %v1286 = vsel %vm1284, %v1283, %v1239
        %vm1287 = vcmask 392192
        %v1288 = vsel %vm1287, %v1285, %v1245
        %v1289 = vsel %vm1287, %v1286, %v1247
        %vm1290 = vcmask 523264
        %v1291 = vsel %vm1290, %v1288, %v1253
        %v1292 = vsel %vm1290, %v1289, %v1255
        %vm1293 = vcmask 654336
        %v1294 = vsel %vm1293, %v1291, %v1261
        %v1295 = vsel %vm1293, %v1292, %v1263
        %vm1296 = vcmask 785408
        %v1297 = vsel %vm1296, %v1294, %v1269
        %v1298 = vsel %vm1296, %v1295, %v1271
        %vm1299 = vcmask 916480
        %v1300 = vsel %vm1299, %v1297, %v1277
        %v1301 = vsel %vm1299, %v1298, %v1279
        %v1302 = vld [vmem:[#allocation10] sm:$0x7]
        %v1303 = vpack.c.bf16 %v1301, %v1300
        %v1304 = vld [vmem:[#allocation8] sm:$0xf]
        %v1305 = vld [vmem:[#allocation8 + $0x4] sm:$0xf]
        %v1306 = vld [vmem:[#allocation8 + $0x8] sm:$0xf]
        %v1307 = vld [vmem:[#allocation8 + $0xc] sm:$0xf]
        %v1308 = vld [vmem:[#allocation8 + $0x10] sm:$0xf]
        %v1309 = vld [vmem:[#allocation8 + $0x14] sm:$0xf]
        %v1310 = vld [vmem:[#allocation8 + $0x18] sm:$0xf]
        %v1311 = vld [vmem:[#allocation8 + $0x1c] sm:$0xf]
        %v1312 = vld [vmem:[#allocation8 + $0x20] sm:$0xf]
        %v1313 = vld [vmem:[#allocation8 + $0x24] sm:$0xf]
        %v1314 = vld [vmem:[#allocation8 + $0x28] sm:$0xf]
        %v1315 = vld [vmem:[#allocation8 + $0x2c] sm:$0xf]
        %v1316 = vld [vmem:[#allocation8 + $0x30] sm:$0xf]
        %v1317 = vld [vmem:[#allocation8 + $0x34] sm:$0xf]
        %v1318 = vld [vmem:[#allocation8 + $0x38] sm:$0xf]
        %v1319 = vld [vmem:[#allocation8 + $0x3c] sm:$0xf]
        %v1320 = vperm.slane %v1302, 0
        %v1337 = vunpack.c.l.b16 %v1304
        %v1338 = vunpack.c.l.b16 %v1305
        %v1339 = vunpack.c.l.b16 %v1306
        %v1340 = vunpack.c.l.b16 %v1307
        %v1341 = vunpack.c.l.b16 %v1308
        %v1342 = vunpack.c.l.b16 %v1309
        %v1343 = vunpack.c.l.b16 %v1310
        %v1344 = vunpack.c.l.b16 %v1311
        %v1345 = vunpack.c.l.b16 %v1312
        %v1346 = vunpack.c.l.b16 %v1313
        %v1347 = vunpack.c.l.b16 %v1314
        %v1348 = vunpack.c.l.b16 %v1315
        %v1349 = vunpack.c.l.b16 %v1316
        %v1350 = vunpack.c.l.b16 %v1317
        %v1351 = vunpack.c.l.b16 %v1318
        %v1352 = vunpack.c.l.b16 %v1319
        %v1353 = vpack.c.b16 %v1338, %v1337
        %v1354 = vpack.c.b16 %v1340, %v1339
        %v1355 = vpack.c.b16 %v1342, %v1341
        %v1356 = vpack.c.b16 %v1344, %v1343
        %v1357 = vpack.c.b16 %v1346, %v1345
        %v1358 = vpack.c.b16 %v1348, %v1347
        %v1359 = vpack.c.b16 %v1350, %v1349
        %v1360 = vpack.c.b16 %v1352, %v1351
        %1369 = vmatpush.bf16.msra.mxu0 %v1360
        %1370 = vmatpush.bf16.msra.mxu0 %v1359
        %1371 = vmatpush.bf16.msra.mxu0 %v1358
        %1372 = vmatpush.bf16.msra.mxu0 %v1357
        %1373 = vmatpush.bf16.msra.mxu0 %v1356
        %1374 = vmatpush.bf16.msra.mxu0 %v1355
        %1375 = vmatpush.bf16.msra.mxu0 %v1354
        %1376 = vmatpush.bf16.msra.mxu0 %v1353
        %1377 = vmatmul.bf16.gmra.mxu0 %v1303
        %v1378 = vpop.f32.mrf.mxu0
        %v1379 = vadd.f32 %v1320, %v1378
        %v1380 = vpop.f32.mrf.mxu0
        %v1381 = vadd.f32 %v1320, %v1380
        %1382 = vdwg.mxu0
        %v1383 = vadd.f32 %v308, %v1379
        %v1384 = vadd.f32 %v309, %v1381
        %1385 = vadd.xlane.f32.xlu0 %v1383
        %v1386 = vpop.xlane.xlu0 %1385
        %1387 = vadd.xlane.f32.xlu0 %v1384
        %v1388 = vpop.xlane.xlu0 %1387
        %v1389 = vrcp.pop 128.0
        %v1390 = vmul.f32 128.0, %v1389
        %v1391 = vsub.f32 1.0, %v1390
        %v1392 = vmul.f32 %v1389, %v1391
        %v1393 = vadd.f32 %v1389, %v1392
        %vm1394 = vweird.f32 %v1389
        %v1395 = vsel %vm1394, %v1389, %v1393
        %v1396 = vmul.f32 %v1386, %v1395
        %v1397 = vmul.f32 %v1388, %v1395
        %v1398 = vsub.f32 %v1383, %v1396
        %v1399 = vsub.f32 %v1384, %v1397
        %v1400 = vmul.f32 %v1398, %v1398
        %v1401 = vmul.f32 %v1399, %v1399
        %1402 = vadd.xlane.f32.xlu0 %v1400
        %v1403 = vpop.xlane.xlu0 %1402
        %1404 = vadd.xlane.f32.xlu0 %v1401
        %v1405 = vpop.xlane.xlu0 %1404
        %v1406 = vmul.f32 %v1403, %v1395
        %v1407 = vmul.f32 %v1405, %v1395
        %v1408 = vadd.f32 %v1406, 1e-05
        %v1409 = vadd.f32 %v1407, 1e-05
        %v1410 = vrsqrt.pop %v1408
        %v1411 = vmul.f32 %v1410, %v1408
        %v1412 = vmul.f32 %v1411, %v1410
        %v1413 = vmul.f32 0.5, %v1412
        %v1414 = vsub.f32 1.5, %v1413
        %v1415 = vmul.f32 %v1410, %v1414
        %vm1416 = vweird.f32 %v1408
        %vm1417 = vweird.f32 %v1410
        %vm1418 = vmor %vm1416, %vm1417
        %v1419 = vsel %vm1418, %v1410, %v1415
        %v1420 = vrsqrt.pop %v1409
        %v1421 = vmul.f32 %v1420, %v1409
        %v1422 = vmul.f32 %v1421, %v1420
        %v1423 = vmul.f32 0.5, %v1422
        %v1424 = vsub.f32 1.5, %v1423
        %v1425 = vmul.f32 %v1420, %v1424
        %vm1426 = vweird.f32 %v1409
        %vm1427 = vweird.f32 %v1420
        %vm1428 = vmor %vm1426, %vm1427
        %v1429 = vsel %vm1428, %v1420, %v1425
        %v1430 = vmul.f32 %v1398, %v1419
        %v1431 = vmul.f32 %v1399, %v1429
        %v1432 = vperm.slane %v1302, 1
        %v1433 = vmul.f32 %v1430, %v1432
        %v1434 = vmul.f32 %v1431, %v1432
        %v1435 = vperm.slane %v1302, 2
        %v1436 = vadd.f32 %v1433, %v1435
        %v1437 = vadd.f32 %v1434, %v1435
        %1438 = vst [vmem:[%s306] sm:$0xff] %v1436
        %1439 = vst [vmem:[%s306 + $0x8] sm:$0xff] %v1437
        %s1440 = sand.u32 %s142, 1
        %s1441 = scalar_lea.sflag [#allocation4], %s1440
        %s1442 = sand.u32 %s142, 1
        %s1443 = smul.addr %s1442, 16
        %s1444 = scalar_lea.vmem [#allocation11], %s1443
        // Predicated region
        $region61: #{tpu_custom_call.1} parent=39 // pred_check
          %p1445 = pneg %p152
        $region62: #{tpu_custom_call.1} parent=39 // pred_check_branch
          %1447 = sbr.rel (%p1445) target = $region64
        $region63: #{tpu_custom_call.1} parent=39 // pred_region
          %1449 = vsyncadd %s1441, 0
          %s1450 = smul.addr %s24, 2
          %s1451 = smul.addr %s1450, 8
          %s1452 = scalar_lea.hbm %s5, %s1451
          %s1453 = sshll.u32 %s1444, 4
          %s1454 = int_to_ptr.vmem [resolvable:$true] %s1453
          %s1455 = sshll.u32 %s1452, 4
          %s1456 = int_to_ptr.hbm [resolvable:$true] %s1455
          %1461 = dma.vmem_to_hbm [thread:$0]  %s1454, 256, %s1456, %s1441, 128, 128, 8
        $region64: #{tpu_custom_call.1} parent=39 // pred_fallthru
          _
      $region40: #{tpu_custom_call.1} parent=5 // pred_fallthru
        _
      %p1462 = scmp.le.s32.totalorder 2, %s19
      // Predicated region
      $region65: #{tpu_custom_call.1} parent=5 // pred_check
        %p1463 = pneg %p1462
      $region66: #{tpu_custom_call.1} parent=5 // pred_check_branch
        %1465 = sbr.rel (%p1463) target = $region68
      $region67: #{tpu_custom_call.1} parent=5 // pred_region
        %s1466 = ssub.s32 %s19, 2
        // Predicated region
        $region69: #{tpu_custom_call.1} parent=67 // pred_check
          %p1467 = pneg %p158
        $region70: #{tpu_custom_call.1} parent=67 // pred_check_branch
          %1469 = sbr.rel (%p1467) target = $region72
        $region71: #{tpu_custom_call.1} parent=67 // pred_region
          %s1470 = sand.u32 %s143, 1
          %s1471 = scalar_lea.sflag [#allocation4], %s1470
          %s1472 = sand.u32 %s143, 1
          %s1473 = smul.addr %s1472, 16
          %s1474 = scalar_lea.vmem [#allocation11], %s1473
          %1476 = dma.done %s1471, 256
        $region72: #{tpu_custom_call.1} parent=67 // pred_fallthru
          _
      $region68: #{tpu_custom_call.1} parent=5 // pred_fallthru
        _
    $region6: #{tpu_custom_call.1} parent=1 // loop_footer
      %s23 = sadd.s32 1, %s19
    $region7: #{tpu_custom_call.1} parent=1 // loop_footer_branch
      %18 = sbr.rel target = $region3
    $region8: #{tpu_custom_call.1} parent=1 // loop_exit
      _
    %1477 = vsyncpa [#allocation3], 1
    %s1478 = scalar_lea.sflag [#allocation3], 1
    %1479 = vsyncpa %s1478, 1
    %1480 = vsyncpa [#allocation6], 1
    %1481 = vsyncpa [#allocation9], 1
    %1482 = vsyncpa [#allocation4], 1
    %s1483 = scalar_lea.sflag [#allocation4], 1
    %1484 = vsyncpa %s1483, 1

</llo_original>
